<compile_context>
chip_gen: v6e
topology: v6e:2x2x1
jax: 0.10.0
libtpu: 0.0.40
codegen_flags: <defaults>
</compile_context>

<pallas_src>
import functools

import jax
import jax.numpy as jnp
from jax.experimental import pallas as pl
from jax.experimental.pallas import tpu as pltpu

# Logical (PyTorch) dims.
STATE_DIM = 376     # Humanoid-v4 observation dim
ACTION_DIM = 17     # Humanoid-v4 action dim
MAX_ACTION = 0.4    # Humanoid-v4 action_space.high[0]
H1 = 400
H2 = 300

# Lane-aligned padded dims used inside the kernel.
D_IN_P = 384        # 376 -> 3 * 128
H1_P = 512          # 400 -> 4 * 128
H2_P = 384          # 300 -> 3 * 128
D_OUT_P = 128       # 17  -> 1 * 128

DEFAULT_BATCH_TILE = 256   # multiple of 256 -> full MXU rows on v6e/v7x


def _round_up(n, m):
    return ((n + m - 1) // m) * m


def _pad2(a, shape):
    """Zero-pad a 2-D array up to `shape` (top-left aligned)."""
    out = jnp.zeros(shape, a.dtype)
    return out.at[: a.shape[0], : a.shape[1]].set(a)


def _actor_kernel(max_action,
                  x_ref, w1_ref, b1_ref, w2_ref, b2_ref, w3_ref, b3_ref,
                  o_ref):
    # fc1 + relu  (bf16 MXU inputs, f32 accumulation, f32 epilogue)
    x = x_ref[...]
    h = jnp.dot(x.astype(jnp.bfloat16), w1_ref[...],
                preferred_element_type=jnp.float32)
    h = jnp.maximum(h + b1_ref[...], 0.0)
    # fc2 + relu
    h = jnp.dot(h.astype(jnp.bfloat16), w2_ref[...],
                preferred_element_type=jnp.float32)
    h = jnp.maximum(h + b2_ref[...], 0.0)
    # fc3 + tanh * max_action
    h = jnp.dot(h.astype(jnp.bfloat16), w3_ref[...],
                preferred_element_type=jnp.float32)
    o_ref[...] = (max_action * jnp.tanh(h + b3_ref[...])).astype(o_ref.dtype)


def init_params(key):
    """Deterministic init mimicking torch.nn.Linear default:
       U(-1/sqrt(fan_in), 1/sqrt(fan_in)) for both weight and bias.
       Weights are stored (in, out); biases as (1, out) rows."""
    keys = jax.random.split(key, 6)

    def linear(kw, kb, fan_in, fan_out):
        bound = 1.0 / jnp.sqrt(jnp.float32(fan_in))
        w = jax.random.uniform(kw, (fan_in, fan_out), jnp.float32, -bound, bound)
        b = jax.random.uniform(kb, (1, fan_out), jnp.float32, -bound, bound)
        return w, b

    w1, b1 = linear(keys[0], keys[1], STATE_DIM, H1)
    w2, b2 = linear(keys[2], keys[3], H1, H2)
    w3, b3 = linear(keys[4], keys[5], H2, ACTION_DIM)
    return (w1, b1, w2, b2, w3, b3)


def prepare_params(params):
    """Zero-pad params to lane-aligned dims; weights -> bf16, biases -> f32.
       Do this once, outside the hot path."""
    w1, b1, w2, b2, w3, b3 = params
    w1p = _pad2(w1, (D_IN_P, H1_P)).astype(jnp.bfloat16)
    b1p = _pad2(b1, (1, H1_P)).astype(jnp.float32)
    w2p = _pad2(w2, (H1_P, H2_P)).astype(jnp.bfloat16)
    b2p = _pad2(b2, (1, H2_P)).astype(jnp.float32)
    w3p = _pad2(w3, (H2_P, D_OUT_P)).astype(jnp.bfloat16)
    b3p = _pad2(b3, (1, D_OUT_P)).astype(jnp.float32)
    return (w1p, b1p, w2p, b2p, w3p, b3p)


def actor_forward(x, padded_params, max_action=MAX_ACTION,
                  batch_tile=DEFAULT_BATCH_TILE):
    """x: (batch, STATE_DIM) f32 -> (batch, ACTION_DIM) f32."""
    w1, b1, w2, b2, w3, b3 = padded_params
    batch = x.shape[0]

    # Batch tile: at most `batch_tile` rows, always a multiple of 8 sublanes.
    tb = min(batch_tile, _round_up(batch, 8))
    b_pad = _round_up(batch, tb)

    # Zero-pad inputs (rows and feature columns); padded columns hit zero
    # weight rows so results are unchanged.
    x_p = jnp.zeros((b_pad, D_IN_P), jnp.float32).at[:batch, :STATE_DIM].set(x)

    kernel = functools.partial(_actor_kernel, float(max_action))
    # TODO(synk): if max_action ever becomes a traced value, pass it as a
    # (1, 1) SMEM scalar input instead of baking it in via functools.partial.

    out = pl.pallas_call(
        kernel,
        out_shape=jax.ShapeDtypeStruct((b_pad, D_OUT_P), jnp.float32),
        grid=(b_pad // tb,),
        in_specs=[
            pl.BlockSpec((tb, D_IN_P), lambda i: (i, 0)),      # x tile
            pl.BlockSpec((D_IN_P, H1_P), lambda i: (0, 0)),    # w1 (resident)
            pl.BlockSpec((1, H1_P), lambda i: (0, 0)),         # b1
            pl.BlockSpec((H1_P, H2_P), lambda i: (0, 0)),      # w2
            pl.BlockSpec((1, H2_P), lambda i: (0, 0)),         # b2
            pl.BlockSpec((H2_P, D_OUT_P), lambda i: (0, 0)),   # w3
            pl.BlockSpec((1, D_OUT_P), lambda i: (0, 0)),      # b3
        ],
        out_specs=pl.BlockSpec((tb, D_OUT_P), lambda i: (i, 0)),
        compiler_params=pltpu.CompilerParams(
            dimension_semantics=("parallel",),
        ),
    )(x_p, w1, b1, w2, b2, w3, b3)

    return out[:batch, :ACTION_DIM]


def actor_forward_ref(x, params, max_action=MAX_ACTION):
    """Pure-JAX f32 reference (matches the PyTorch module)."""
    w1, b1, w2, b2, w3, b3 = params
    h = jnp.maximum(x @ w1 + b1, 0.0)
    h = jnp.maximum(h @ w2 + b2, 0.0)
    return max_action * jnp.tanh(h @ w3 + b3)


if __name__ == "__main__":
    key = jax.random.PRNGKey(0)
    k_params, k_x = jax.random.split(key)

    params = init_params(k_params)
    padded_params = prepare_params(params)

    # Primary check: small batch.
    batch = 8
    x = jax.random.normal(k_x, (batch, STATE_DIM), jnp.float32)
    out = jax.block_until_ready(actor_forward(x, padded_params))
    ref = actor_forward_ref(x, params)
    assert out.shape == (batch, ACTION_DIM), out.shape
    assert jnp.allclose(out, ref, atol=2e-2, rtol=2e-2), (
        "mismatch vs reference: max abs err "
        f"{float(jnp.max(jnp.abs(out - ref)))}")

    # Secondary check: batch that needs row padding.
    batch2 = 5
    x2 = x[:batch2]
    out2 = jax.block_until_ready(actor_forward(x2, padded_params))
    ref2 = actor_forward_ref(x2, params)
    assert out2.shape == (batch2, ACTION_DIM), out2.shape
    assert jnp.allclose(out2, ref2, atol=2e-2, rtol=2e-2), "mismatch (padded batch)"

    print("KERNEL_OK")
</pallas_src>

<mosaic_0001>
module attributes {stable_mosaic.version = 11 : i64} {
  func.func @_actor_kernel(%arg0: i32, %arg1: memref<8x384xf32, #tpu.memory_space<vmem>>, %arg2: memref<384x512xbf16, #tpu.memory_space<vmem>>, %arg3: memref<1x512xf32, #tpu.memory_space<vmem>>, %arg4: memref<512x384xbf16, #tpu.memory_space<vmem>>, %arg5: memref<1x384xf32, #tpu.memory_space<vmem>>, %arg6: memref<384x128xbf16, #tpu.memory_space<vmem>>, %arg7: memref<1x128xf32, #tpu.memory_space<vmem>>, %arg8: memref<8x128xf32, #tpu.memory_space<vmem>>) attributes {dimension_semantics = [#tpu.dimension_semantics<parallel>], iteration_bounds = array<i64: 1>, scalar_prefetch = 0 : i64, scratch_operands = 0 : i64, tpu.core_type = #tpu.core_type<tc>, window_params = [{transform_indices = @transform_0, window_bounds = array<i64: 8, 384>}, {pipeline_mode = #tpu.pipeline_mode<synchronous>, transform_indices = @transform_1, window_bounds = array<i64: 384, 512>}, {pipeline_mode = #tpu.pipeline_mode<synchronous>, transform_indices = @transform_2, window_bounds = array<i64: 1, 512>}, {pipeline_mode = #tpu.pipeline_mode<synchronous>, transform_indices = @transform_3, window_bounds = array<i64: 512, 384>}, {pipeline_mode = #tpu.pipeline_mode<synchronous>, transform_indices = @transform_4, window_bounds = array<i64: 1, 384>}, {pipeline_mode = #tpu.pipeline_mode<synchronous>, transform_indices = @transform_5, window_bounds = array<i64: 384, 128>}, {pipeline_mode = #tpu.pipeline_mode<synchronous>, transform_indices = @transform_6, window_bounds = array<i64: 1, 128>}, {transform_indices = @transform_7, window_bounds = array<i64: 8, 128>}]} {
    %c0 = arith.constant 0 : index
    %c0_0 = arith.constant 0 : index
    %0 = vector.load %arg1[%c0, %c0_0] : memref<8x384xf32, #tpu.memory_space<vmem>>, vector<8x384xf32>
    %1 = arith.truncf %0 : vector<8x384xf32> to vector<8x384xbf16>
    %c0_1 = arith.constant 0 : index
    %c0_2 = arith.constant 0 : index
    %2 = vector.load %arg2[%c0_1, %c0_2] : memref<384x512xbf16, #tpu.memory_space<vmem>>, vector<384x512xbf16>
    %cst = arith.constant dense<0.000000e+00> : vector<8x512xf32>
    %3 = tpu.matmul %1, %2, %cst {dimension_numbers = #tpu.dot_dimension_numbers<[1], [0], [0], [1], [0, 0, 1, 1], [], []>} : vector<8x384xbf16>, vector<384x512xbf16>, vector<8x512xf32> -> vector<8x512xf32>
    %c0_3 = arith.constant 0 : index
    %c0_4 = arith.constant 0 : index
    %4 = vector.load %arg3[%c0_3, %c0_4] : memref<1x512xf32, #tpu.memory_space<vmem>>, vector<1x512xf32>
    %5 = vector.broadcast %4 : vector<1x512xf32> to vector<8x512xf32>
    %6 = arith.addf %3, %5 : vector<8x512xf32>
    %cst_5 = arith.constant 0.000000e+00 : f32
    %7 = vector.broadcast %cst_5 : f32 to vector<8x512xf32>
    %8 = arith.maximumf %6, %7 : vector<8x512xf32>
    %9 = arith.truncf %8 : vector<8x512xf32> to vector<8x512xbf16>
    %c0_6 = arith.constant 0 : index
    %c0_7 = arith.constant 0 : index
    %10 = vector.load %arg4[%c0_6, %c0_7] : memref<512x384xbf16, #tpu.memory_space<vmem>>, vector<512x384xbf16>
    %cst_8 = arith.constant dense<0.000000e+00> : vector<8x384xf32>
    %11 = tpu.matmul %9, %10, %cst_8 {dimension_numbers = #tpu.dot_dimension_numbers<[1], [0], [0], [1], [0, 0, 1, 1], [], []>} : vector<8x512xbf16>, vector<512x384xbf16>, vector<8x384xf32> -> vector<8x384xf32>
    %c0_9 = arith.constant 0 : index
    %c0_10 = arith.constant 0 : index
    %12 = vector.load %arg5[%c0_9, %c0_10] : memref<1x384xf32, #tpu.memory_space<vmem>>, vector<1x384xf32>
    %13 = vector.broadcast %12 : vector<1x384xf32> to vector<8x384xf32>
    %14 = arith.addf %11, %13 : vector<8x384xf32>
    %cst_11 = arith.constant 0.000000e+00 : f32
    %15 = vector.broadcast %cst_11 : f32 to vector<8x384xf32>
    %16 = arith.maximumf %14, %15 : vector<8x384xf32>
    %17 = arith.truncf %16 : vector<8x384xf32> to vector<8x384xbf16>
    %c0_12 = arith.constant 0 : index
    %c0_13 = arith.constant 0 : index
    %18 = vector.load %arg6[%c0_12, %c0_13] : memref<384x128xbf16, #tpu.memory_space<vmem>>, vector<384x128xbf16>
    %cst_14 = arith.constant dense<0.000000e+00> : vector<8x128xf32>
    %19 = tpu.matmul %17, %18, %cst_14 {dimension_numbers = #tpu.dot_dimension_numbers<[1], [0], [0], [1], [0, 0, 1, 1], [], []>} : vector<8x384xbf16>, vector<384x128xbf16>, vector<8x128xf32> -> vector<8x128xf32>
    %c0_15 = arith.constant 0 : index
    %c0_16 = arith.constant 0 : index
    %20 = vector.load %arg7[%c0_15, %c0_16] : memref<1x128xf32, #tpu.memory_space<vmem>>, vector<1x128xf32>
    %21 = vector.broadcast %20 : vector<1x128xf32> to vector<8x128xf32>
    %22 = arith.addf %19, %21 : vector<8x128xf32>
    %23 = math.tanh %22 : vector<8x128xf32>
    %cst_17 = arith.constant 4.000000e-01 : f32
    %24 = vector.broadcast %cst_17 : f32 to vector<8x128xf32>
    %25 = arith.mulf %24, %23 : vector<8x128xf32>
    %c0_18 = arith.constant 0 : index
    %c0_19 = arith.constant 0 : index
    %26 = vector.load %arg8[%c0_18, %c0_19] : memref<8x128xf32, #tpu.memory_space<vmem>>, vector<8x128xf32>
    tpu.vector_store %arg8[%c0_18, %c0_19], %25 {strides = array<i32>} : memref<8x128xf32, #tpu.memory_space<vmem>>, vector<8x128xf32>,
    return
  }
  func.func @transform_0(%arg0: i32) -> (i32, i32) {
    %c0_i32 = arith.constant 0 : i32
    %c0_i32_0 = arith.constant 0 : i32
    return %arg0, %c0_i32 : i32, i32
  }
  func.func @transform_1(%arg0: i32) -> (i32, i32) {
    %c0_i32 = arith.constant 0 : i32
    %c0_i32_0 = arith.constant 0 : i32
    %c0_i32_1 = arith.constant 0 : i32
    return %c0_i32, %c0_i32_0 : i32, i32
  }
  func.func @transform_2(%arg0: i32) -> (i32, i32) {
    %c0_i32 = arith.constant 0 : i32
    %c0_i32_0 = arith.constant 0 : i32
    %c0_i32_1 = arith.constant 0 : i32
    return %c0_i32, %c0_i32_0 : i32, i32
  }
  func.func @transform_3(%arg0: i32) -> (i32, i32) {
    %c0_i32 = arith.constant 0 : i32
    %c0_i32_0 = arith.constant 0 : i32
    %c0_i32_1 = arith.constant 0 : i32
    return %c0_i32, %c0_i32_0 : i32, i32
  }
  func.func @transform_4(%arg0: i32) -> (i32, i32) {
    %c0_i32 = arith.constant 0 : i32
    %c0_i32_0 = arith.constant 0 : i32
    %c0_i32_1 = arith.constant 0 : i32
    return %c0_i32, %c0_i32_0 : i32, i32
  }
  func.func @transform_5(%arg0: i32) -> (i32, i32) {
    %c0_i32 = arith.constant 0 : i32
    %c0_i32_0 = arith.constant 0 : i32
    %c0_i32_1 = arith.constant 0 : i32
    return %c0_i32, %c0_i32_0 : i32, i32
  }
  func.func @transform_6(%arg0: i32) -> (i32, i32) {
    %c0_i32 = arith.constant 0 : i32
    %c0_i32_0 = arith.constant 0 : i32
    %c0_i32_1 = arith.constant 0 : i32
    return %c0_i32, %c0_i32_0 : i32, i32
  }
  func.func @transform_7(%arg0: i32) -> (i32, i32) {
    %c0_i32 = arith.constant 0 : i32
    %c0_i32_0 = arith.constant 0 : i32
    return %arg0, %c0_i32 : i32, i32
  }
}

</mosaic_0001>

<llo_original>
// kernel: tpu_custom_call.1
$region0: #{tpu_custom_call.1}
  #allocation0 [shape = 'u32[]', space=smem, size = 0x4, offset = 0x4, fixed_abs, tag = 'smem constant byte address 0x4 - core index']
  #allocation1 [shape = 'u32[144,128]{1,0:T(1,128)}', space=vmem, size = 0x12000, scoped, tag = 'internal scratch']
  %s0 = inlined_call_operand.hbm [shape: f32[8,384], index: 0, kind: input, shape index: {}]
  %s1 = inlined_call_operand.hbm [shape: bf16[384,512], index: 1, kind: input, shape index: {}]
  %s2 = inlined_call_operand.hbm [shape: f32[1,512], index: 2, kind: input, shape index: {}]
  %s3 = inlined_call_operand.hbm [shape: bf16[512,384], index: 3, kind: input, shape index: {}]
  %s4 = inlined_call_operand.vmem [shape: f32[1,384], index: 4, kind: input, shape index: {}]
  %s5 = inlined_call_operand.hbm [shape: bf16[384,128], index: 5, kind: input, shape index: {}]
  %s6 = inlined_call_operand.vmem [shape: f32[1,128], index: 6, kind: input, shape index: {}]
  %s7 = inlined_call_operand.hbm [shape: f32[8,128], index: 7, kind: output, shape index: {}]
  %s8 = sld [smem:[#allocation0]]
  $region58: #{tpu_custom_call.1} parent=0
    _
  %s10 = ssub.s32 1, %s8
  %s11 = scalar_select 0, %s10, %s8
  $region1: #{tpu_custom_call.1} parent=0
    #allocation2 [shape = 'u8[12288]{0}', space=vmem, size = 0x3000, scoped, tag = 'input window, operand 0, single buffered']
    #allocation3 [shape = 's32[1]{0}', space=sflag, size = 0x4, scoped, tag = 'scoped memory for tpu_custom_call.1']
    #allocation4 [shape = 's32[1]{0}', space=sflag, size = 0x4, scoped, tag = 'scoped memory for tpu_custom_call.1']
    #allocation5 [shape = 'u8[393216]{0}', space=vmem, size = 0x60000, scoped, tag = 'input window, operand 1, single buffered']
    #allocation6 [shape = 's32[1]{0}', space=sflag, size = 0x4, scoped, tag = 'scoped memory for tpu_custom_call.1']
    #allocation7 [shape = 'u8[2048]{0}', space=vmem, size = 0x800, scoped, tag = 'input window, operand 2, single buffered']
    #allocation8 [shape = 'u8[393216]{0}', space=vmem, size = 0x60000, scoped, tag = 'input window, operand 3, single buffered']
    #allocation9 [shape = 's32[1]{0}', space=sflag, size = 0x4, scoped, tag = 'scoped memory for tpu_custom_call.1']
    #allocation10 [shape = 'u8[98304]{0}', space=vmem, size = 0x18000, scoped, tag = 'input window, operand 5, single buffered']
    #allocation11 [shape = 'u8[4096]{0}', space=vmem, size = 0x1000, scoped, tag = 'output window, operand 0, single buffered']
    %12 = vsyncpa [#allocation3], 0
    %13 = vsyncpa [#allocation6], 0
    %14 = vsyncpa [#allocation9], 0
    %15 = vsyncpa [#allocation4], 0
    // Predicated region
    $region2: #{tpu_custom_call.1} parent=1 // pred_check
      _
    $region3: #{tpu_custom_call.1} parent=1 // pred_check_branch
      %17 = sbr.rel (0) target = $region5
    $region4: #{tpu_custom_call.1} parent=1 // pred_region
      %s19 = ssub.s32 384, 384
      %20 = vsyncadd [#allocation3], %s19
      %s22 = sshll.u32 [#allocation2], 4
      %s23 = int_to_ptr.vmem [resolvable:$true] %s22
      %25 = dma.hbm_to_vmem [thread:$0]  %s0, 384, %s23, [#allocation3]
    $region5: #{tpu_custom_call.1} parent=1 // pred_fallthru
      _
    // Predicated region
    $region6: #{tpu_custom_call.1} parent=1 // pred_check
      _
    $region7: #{tpu_custom_call.1} parent=1 // pred_check_branch
      %27 = sbr.rel (0) target = $region9
    $region8: #{tpu_custom_call.1} parent=1 // pred_region
      %s29 = ssub.s32 12288, 12288
      %30 = vsyncadd [#allocation6], %s29
      %s31 = sshll.u32 [#allocation5], 4
      %s32 = int_to_ptr.vmem [resolvable:$true] %s31
      %37 = dma.hbm_to_vmem [thread:$0]  %s1, 12288, %s32, [#allocation6], 256, 256, 16
    $region9: #{tpu_custom_call.1} parent=1 // pred_fallthru
      _
    // Predicated region
    $region10: #{tpu_custom_call.1} parent=1 // pred_check
      _
    $region11: #{tpu_custom_call.1} parent=1 // pred_check_branch
      %39 = sbr.rel (0) target = $region13
    $region12: #{tpu_custom_call.1} parent=1 // pred_region
      %s41 = ssub.s32 64, 64
      %42 = vsyncadd [#allocation6], %s41
      %s44 = sshll.u32 [#allocation7], 4
      %s45 = int_to_ptr.vmem [resolvable:$true] %s44
      %47 = dma.hbm_to_vmem [thread:$0]  %s2, 64, %s45, [#allocation6]
    $region13: #{tpu_custom_call.1} parent=1 // pred_fallthru
      _
    // Predicated region
    $region14: #{tpu_custom_call.1} parent=1 // pred_check
      _
    $region15: #{tpu_custom_call.1} parent=1 // pred_check_branch
      %49 = sbr.rel (0) target = $region17
    $region16: #{tpu_custom_call.1} parent=1 // pred_region
      %s51 = ssub.s32 12288, 12288
      %52 = vsyncadd [#allocation9], %s51
      %s53 = sshll.u32 [#allocation8], 4
      %s54 = int_to_ptr.vmem [resolvable:$true] %s53
      %59 = dma.hbm_to_vmem [thread:$0]  %s3, 12288, %s54, [#allocation9], 192, 192, 12
    $region17: #{tpu_custom_call.1} parent=1 // pred_fallthru
      _
    // Predicated region
    $region18: #{tpu_custom_call.1} parent=1 // pred_check
      _
    $region19: #{tpu_custom_call.1} parent=1 // pred_check_branch
      %61 = sbr.rel (0) target = $region21
    $region20: #{tpu_custom_call.1} parent=1 // pred_region
      _
    $region21: #{tpu_custom_call.1} parent=1 // pred_fallthru
      _
    // Predicated region
    $region22: #{tpu_custom_call.1} parent=1 // pred_check
      _
    $region23: #{tpu_custom_call.1} parent=1 // pred_check_branch
      %63 = sbr.rel (0) target = $region25
    $region24: #{tpu_custom_call.1} parent=1 // pred_region
      %s65 = ssub.s32 3072, 3072
      %66 = vsyncadd [#allocation9], %s65
      %s67 = sshll.u32 [#allocation10], 4
      %s68 = int_to_ptr.vmem [resolvable:$true] %s67
      %73 = dma.hbm_to_vmem [thread:$0]  %s5, 3072, %s68, [#allocation9], 64, 64, 4
    $region25: #{tpu_custom_call.1} parent=1 // pred_fallthru
      _
    // Predicated region
    $region26: #{tpu_custom_call.1} parent=1 // pred_check
      _
    $region27: #{tpu_custom_call.1} parent=1 // pred_check_branch
      %75 = sbr.rel (0) target = $region29
    $region28: #{tpu_custom_call.1} parent=1 // pred_region
      _
    $region29: #{tpu_custom_call.1} parent=1 // pred_fallthru
      _
    // Predicated region
    $region30: #{tpu_custom_call.1} parent=1 // pred_check
      _
    $region31: #{tpu_custom_call.1} parent=1 // pred_check_branch
      %77 = sbr.rel (0) target = $region33
    $region32: #{tpu_custom_call.1} parent=1 // pred_region
      %78 = dma.done [#allocation3], 384
    $region33: #{tpu_custom_call.1} parent=1 // pred_fallthru
      _
    // Predicated region
    $region34: #{tpu_custom_call.1} parent=1 // pred_check
      _
    $region35: #{tpu_custom_call.1} parent=1 // pred_check_branch
      %80 = sbr.rel (0) target = $region37
    $region36: #{tpu_custom_call.1} parent=1 // pred_region
      %81 = dma.done [#allocation6], 12288
    $region37: #{tpu_custom_call.1} parent=1 // pred_fallthru
      _
    // Predicated region
    $region38: #{tpu_custom_call.1} parent=1 // pred_check
      _
    $region39: #{tpu_custom_call.1} parent=1 // pred_check_branch
      %83 = sbr.rel (0) target = $region41
    $region40: #{tpu_custom_call.1} parent=1 // pred_region
      %84 = dma.done [#allocation6], 64
    $region41: #{tpu_custom_call.1} parent=1 // pred_fallthru
      _
    // Predicated region
    $region42: #{tpu_custom_call.1} parent=1 // pred_check
      _
    $region43: #{tpu_custom_call.1} parent=1 // pred_check_branch
      %86 = sbr.rel (0) target = $region45
    $region44: #{tpu_custom_call.1} parent=1 // pred_region
      %87 = dma.done [#allocation9], 12288
    $region45: #{tpu_custom_call.1} parent=1 // pred_fallthru
      _
    // Predicated region
    $region46: #{tpu_custom_call.1} parent=1 // pred_check
      _
    $region47: #{tpu_custom_call.1} parent=1 // pred_check_branch
      %89 = sbr.rel (0) target = $region49
    $region48: #{tpu_custom_call.1} parent=1 // pred_region
      %90 = dma.done [#allocation9], 3072
    $region49: #{tpu_custom_call.1} parent=1 // pred_fallthru
      _
    %v92 = vld [vmem:[#allocation2] sm:$0xff]
    %v93 = vld [vmem:[#allocation2 + $0x8] sm:$0xff]
    %v94 = vld [vmem:[#allocation2 + $0x10] sm:$0xff]
    %v95 = vpack.c.bf16 %v92, %v92
    %v96 = vpack.c.bf16 %v93, %v93
    %v97 = vpack.c.bf16 %v94, %v94
    %v98 = vld [vmem:[#allocation5] sm:$0xff]
    %v99 = vld [vmem:[#allocation5 + $0x8] sm:$0xff]
    %v100 = vld [vmem:[#allocation5 + $0x10] sm:$0xff]
    %v101 = vld [vmem:[#allocation5 + $0x18] sm:$0xff]
    %v102 = vld [vmem:[#allocation5 + $0x20] sm:$0xff]
    %v103 = vld [vmem:[#allocation5 + $0x28] sm:$0xff]
    %v104 = vld [vmem:[#allocation5 + $0x30] sm:$0xff]
    %v105 = vld [vmem:[#allocation5 + $0x38] sm:$0xff]
    %v106 = vld [vmem:[#allocation5 + $0x40] sm:$0xff]
    %v107 = vld [vmem:[#allocation5 + $0x48] sm:$0xff]
    %v108 = vld [vmem:[#allocation5 + $0x50] sm:$0xff]
    %v109 = vld [vmem:[#allocation5 + $0x58] sm:$0xff]
    %v110 = vld [vmem:[#allocation5 + $0x60] sm:$0xff]
    %v111 = vld [vmem:[#allocation5 + $0x68] sm:$0xff]
    %v112 = vld [vmem:[#allocation5 + $0x70] sm:$0xff]
    %v113 = vld [vmem:[#allocation5 + $0x78] sm:$0xff]
    %v114 = vld [vmem:[#allocation5 + $0x80] sm:$0xff]
    %v115 = vld [vmem:[#allocation5 + $0x88] sm:$0xff]
    %v116 = vld [vmem:[#allocation5 + $0x90] sm:$0xff]
    %v117 = vld [vmem:[#allocation5 + $0x98] sm:$0xff]
    %v118 = vld [vmem:[#allocation5 + $0xa0] sm:$0xff]
    %v119 = vld [vmem:[#allocation5 + $0xa8] sm:$0xff]
    %v120 = vld [vmem:[#allocation5 + $0xb0] sm:$0xff]
    %v121 = vld [vmem:[#allocation5 + $0xb8] sm:$0xff]
    %v122 = vld [vmem:[#allocation5 + $0xc0] sm:$0xff]
    %v123 = vld [vmem:[#allocation5 + $0xc8] sm:$0xff]
    %v124 = vld [vmem:[#allocation5 + $0xd0] sm:$0xff]
    %v125 = vld [vmem:[#allocation5 + $0xd8] sm:$0xff]
    %v126 = vld [vmem:[#allocation5 + $0xe0] sm:$0xff]
    %v127 = vld [vmem:[#allocation5 + $0xe8] sm:$0xff]
    %v128 = vld [vmem:[#allocation5 + $0xf0] sm:$0xff]
    %v129 = vld [vmem:[#allocation5 + $0xf8] sm:$0xff]
    %v130 = vld [vmem:[#allocation5 + $0x100] sm:$0xff]
    %v131 = vld [vmem:[#allocation5 + $0x108] sm:$0xff]
    %v132 = vld [vmem:[#allocation5 + $0x110] sm:$0xff]
    %v133 = vld [vmem:[#allocation5 + $0x118] sm:$0xff]
    %v134 = vld [vmem:[#allocation5 + $0x120] sm:$0xff]
    %v135 = vld [vmem:[#allocation5 + $0x128] sm:$0xff]
    %v136 = vld [vmem:[#allocation5 + $0x130] sm:$0xff]
    %v137 = vld [vmem:[#allocation5 + $0x138] sm:$0xff]
    %v138 = vld [vmem:[#allocation5 + $0x140] sm:$0xff]
    %v139 = vld [vmem:[#allocation5 + $0x148] sm:$0xff]
    %v140 = vld [vmem:[#allocation5 + $0x150] sm:$0xff]
    %v141 = vld [vmem:[#allocation5 + $0x158] sm:$0xff]
    %v142 = vld [vmem:[#allocation5 + $0x160] sm:$0xff]
    %v143 = vld [vmem:[#allocation5 + $0x168] sm:$0xff]
    %v144 = vld [vmem:[#allocation5 + $0x170] sm:$0xff]
    %v145 = vld [vmem:[#allocation5 + $0x178] sm:$0xff]
    %v146 = vld [vmem:[#allocation5 + $0x180] sm:$0xff]
    %v147 = vld [vmem:[#allocation5 + $0x188] sm:$0xff]
    %v148 = vld [vmem:[#allocation5 + $0x190] sm:$0xff]
    %v149 = vld [vmem:[#allocation5 + $0x198] sm:$0xff]
    %v150 = vld [vmem:[#allocation5 + $0x1a0] sm:$0xff]
    %v151 = vld [vmem:[#allocation5 + $0x1a8] sm:$0xff]
    %v152 = vld [vmem:[#allocation5 + $0x1b0] sm:$0xff]
    %v153 = vld [vmem:[#allocation5 + $0x1b8] sm:$0xff]
    %v154 = vld [vmem:[#allocation5 + $0x1c0] sm:$0xff]
    %v155 = vld [vmem:[#allocation5 + $0x1c8] sm:$0xff]
    %v156 = vld [vmem:[#allocation5 + $0x1d0] sm:$0xff]
    %v157 = vld [vmem:[#allocation5 + $0x1d8] sm:$0xff]
    %v158 = vld [vmem:[#allocation5 + $0x1e0] sm:$0xff]
    %v159 = vld [vmem:[#allocation5 + $0x1e8] sm:$0xff]
    %v160 = vld [vmem:[#allocation5 + $0x1f0] sm:$0xff]
    %v161 = vld [vmem:[#allocation5 + $0x1f8] sm:$0xff]
    %v162 = vld [vmem:[#allocation5 + $0x200] sm:$0xff]
    %v163 = vld [vmem:[#allocation5 + $0x208] sm:$0xff]
    %v164 = vld [vmem:[#allocation5 + $0x210] sm:$0xff]
    %v165 = vld [vmem:[#allocation5 + $0x218] sm:$0xff]
    %v166 = vld [vmem:[#allocation5 + $0x220] sm:$0xff]
    %v167 = vld [vmem:[#allocation5 + $0x228] sm:$0xff]
    %v168 = vld [vmem:[#allocation5 + $0x230] sm:$0xff]
    %v169 = vld [vmem:[#allocation5 + $0x238] sm:$0xff]
    %v170 = vld [vmem:[#allocation5 + $0x240] sm:$0xff]
    %v171 = vld [vmem:[#allocation5 + $0x248] sm:$0xff]
    %v172 = vld [vmem:[#allocation5 + $0x250] sm:$0xff]
    %v173 = vld [vmem:[#allocation5 + $0x258] sm:$0xff]
    %v174 = vld [vmem:[#allocation5 + $0x260] sm:$0xff]
    %v175 = vld [vmem:[#allocation5 + $0x268] sm:$0xff]
    %v176 = vld [vmem:[#allocation5 + $0x270] sm:$0xff]
    %v177 = vld [vmem:[#allocation5 + $0x278] sm:$0xff]
    %v178 = vld [vmem:[#allocation5 + $0x280] sm:$0xff]
    %v179 = vld [vmem:[#allocation5 + $0x288] sm:$0xff]
    %v180 = vld [vmem:[#allocation5 + $0x290] sm:$0xff]
    %v181 = vld [vmem:[#allocation5 + $0x298] sm:$0xff]
    %v182 = vld [vmem:[#allocation5 + $0x2a0] sm:$0xff]
    %v183 = vld [vmem:[#allocation5 + $0x2a8] sm:$0xff]
    %v184 = vld [vmem:[#allocation5 + $0x2b0] sm:$0xff]
    %v185 = vld [vmem:[#allocation5 + $0x2b8] sm:$0xff]
    %v186 = vld [vmem:[#allocation5 + $0x2c0] sm:$0xff]
    %v187 = vld [vmem:[#allocation5 + $0x2c8] sm:$0xff]
    %v188 = vld [vmem:[#allocation5 + $0x2d0] sm:$0xff]
    %v189 = vld [vmem:[#allocation5 + $0x2d8] sm:$0xff]
    %v190 = vld [vmem:[#allocation5 + $0x2e0] sm:$0xff]
    %v191 = vld [vmem:[#allocation5 + $0x2e8] sm:$0xff]
    %v192 = vld [vmem:[#allocation5 + $0x2f0] sm:$0xff]
    %v193 = vld [vmem:[#allocation5 + $0x2f8] sm:$0xff]
    %v194 = vld [vmem:[#allocation7] sm:$0xf]
    %v196 = vlaneseq
    %v197 = vshrl.u32 %v196, 7
    %v198 = vsub.s32 0, %v197
    %v199 = vrot.slane %v194, %v198
    %v200 = vlaneseq
    %v201 = vshrl.u32 %v200, 7
    %v202 = vsub.s32 1, %v201
    %v203 = vrot.slane %v194, %v202
    %v204 = vlaneseq
    %v205 = vshrl.u32 %v204, 7
    %v206 = vsub.s32 2, %v205
    %v207 = vrot.slane %v194, %v206
    %v208 = vlaneseq
    %v209 = vshrl.u32 %v208, 7
    %v210 = vsub.s32 3, %v209
    %v211 = vrot.slane %v194, %v210
    %v312 = vunpack.c.l.b16 %v98
    %v313 = vunpack.c.h.b16 %v98
    %v314 = vunpack.c.l.b16 %v99
    %v315 = vunpack.c.h.b16 %v99
    %v316 = vunpack.c.l.b16 %v100
    %v317 = vunpack.c.h.b16 %v100
    %v318 = vunpack.c.l.b16 %v101
    %v319 = vunpack.c.h.b16 %v101
    %v320 = vunpack.c.l.b16 %v102
    %v321 = vunpack.c.h.b16 %v102
    %v322 = vunpack.c.l.b16 %v103
    %v323 = vunpack.c.h.b16 %v103
    %v324 = vunpack.c.l.b16 %v104
    %v325 = vunpack.c.h.b16 %v104
    %v326 = vunpack.c.l.b16 %v105
    %v327 = vunpack.c.h.b16 %v105
    %v328 = vunpack.c.l.b16 %v106
    %v329 = vunpack.c.h.b16 %v106
    %v330 = vunpack.c.l.b16 %v107
    %v331 = vunpack.c.h.b16 %v107
    %v332 = vunpack.c.l.b16 %v108
    %v333 = vunpack.c.h.b16 %v108
    %v334 = vunpack.c.l.b16 %v109
    %v335 = vunpack.c.h.b16 %v109
    %v336 = vunpack.c.l.b16 %v110
    %v337 = vunpack.c.h.b16 %v110
    %v338 = vunpack.c.l.b16 %v111
    %v339 = vunpack.c.h.b16 %v111
    %v340 = vunpack.c.l.b16 %v112
    %v341 = vunpack.c.h.b16 %v112
    %v342 = vunpack.c.l.b16 %v113
    %v343 = vunpack.c.h.b16 %v113
    %v344 = vunpack.c.l.b16 %v114
    %v345 = vunpack.c.h.b16 %v114
    %v346 = vunpack.c.l.b16 %v115
    %v347 = vunpack.c.h.b16 %v115
    %v348 = vunpack.c.l.b16 %v116
    %v349 = vunpack.c.h.b16 %v116
    %v350 = vunpack.c.l.b16 %v117
    %v351 = vunpack.c.h.b16 %v117
    %v352 = vunpack.c.l.b16 %v118
    %v353 = vunpack.c.h.b16 %v118
    %v354 = vunpack.c.l.b16 %v119
    %v355 = vunpack.c.h.b16 %v119
    %v356 = vunpack.c.l.b16 %v120
    %v357 = vunpack.c.h.b16 %v120
    %v358 = vunpack.c.l.b16 %v121
    %v359 = vunpack.c.h.b16 %v121
    %v360 = vunpack.c.l.b16 %v122
    %v361 = vunpack.c.h.b16 %v122
    %v362 = vunpack.c.l.b16 %v123
    %v363 = vunpack.c.h.b16 %v123
    %v364 = vunpack.c.l.b16 %v124
    %v365 = vunpack.c.h.b16 %v124
    %v366 = vunpack.c.l.b16 %v125
    %v367 = vunpack.c.h.b16 %v125
    %v368 = vunpack.c.l.b16 %v126
    %v369 = vunpack.c.h.b16 %v126
    %v370 = vunpack.c.l.b16 %v127
    %v371 = vunpack.c.h.b16 %v127
    %v372 = vunpack.c.l.b16 %v128
    %v373 = vunpack.c.h.b16 %v128
    %v374 = vunpack.c.l.b16 %v129
    %v375 = vunpack.c.h.b16 %v129
    %v376 = vunpack.c.l.b16 %v130
    %v377 = vunpack.c.h.b16 %v130
    %v378 = vunpack.c.l.b16 %v131
    %v379 = vunpack.c.h.b16 %v131
    %v380 = vunpack.c.l.b16 %v132
    %v381 = vunpack.c.h.b16 %v132
    %v382 = vunpack.c.l.b16 %v133
    %v383 = vunpack.c.h.b16 %v133
    %v384 = vunpack.c.l.b16 %v134
    %v385 = vunpack.c.h.b16 %v134
    %v386 = vunpack.c.l.b16 %v135
    %v387 = vunpack.c.h.b16 %v135
    %v388 = vunpack.c.l.b16 %v136
    %v389 = vunpack.c.h.b16 %v136
    %v390 = vunpack.c.l.b16 %v137
    %v391 = vunpack.c.h.b16 %v137
    %v392 = vunpack.c.l.b16 %v138
    %v393 = vunpack.c.h.b16 %v138
    %v394 = vunpack.c.l.b16 %v139
    %v395 = vunpack.c.h.b16 %v139
    %v396 = vunpack.c.l.b16 %v140
    %v397 = vunpack.c.h.b16 %v140
    %v398 = vunpack.c.l.b16 %v141
    %v399 = vunpack.c.h.b16 %v141
    %v400 = vunpack.c.l.b16 %v142
    %v401 = vunpack.c.h.b16 %v142
    %v402 = vunpack.c.l.b16 %v143
    %v403 = vunpack.c.h.b16 %v143
    %v404 = vunpack.c.l.b16 %v144
    %v405 = vunpack.c.h.b16 %v144
    %v406 = vunpack.c.l.b16 %v145
    %v407 = vunpack.c.h.b16 %v145
    %v408 = vunpack.c.l.b16 %v146
    %v409 = vunpack.c.h.b16 %v146
    %v410 = vunpack.c.l.b16 %v147
    %v411 = vunpack.c.h.b16 %v147
    %v412 = vunpack.c.l.b16 %v148
    %v413 = vunpack.c.h.b16 %v148
    %v414 = vunpack.c.l.b16 %v149
    %v415 = vunpack.c.h.b16 %v149
    %v416 = vunpack.c.l.b16 %v150
    %v417 = vunpack.c.h.b16 %v150
    %v418 = vunpack.c.l.b16 %v151
    %v419 = vunpack.c.h.b16 %v151
    %v420 = vunpack.c.l.b16 %v152
    %v421 = vunpack.c.h.b16 %v152
    %v422 = vunpack.c.l.b16 %v153
    %v423 = vunpack.c.h.b16 %v153
    %v424 = vunpack.c.l.b16 %v154
    %v425 = vunpack.c.h.b16 %v154
    %v426 = vunpack.c.l.b16 %v155
    %v427 = vunpack.c.h.b16 %v155
    %v428 = vunpack.c.l.b16 %v156
    %v429 = vunpack.c.h.b16 %v156
    %v430 = vunpack.c.l.b16 %v157
    %v431 = vunpack.c.h.b16 %v157
    %v432 = vunpack.c.l.b16 %v158
    %v433 = vunpack.c.h.b16 %v158
    %v434 = vunpack.c.l.b16 %v159
    %v435 = vunpack.c.h.b16 %v159
    %v436 = vunpack.c.l.b16 %v160
    %v437 = vunpack.c.h.b16 %v160
    %v438 = vunpack.c.l.b16 %v161
    %v439 = vunpack.c.h.b16 %v161
    %v440 = vunpack.c.l.b16 %v162
    %v441 = vunpack.c.h.b16 %v162
    %v442 = vunpack.c.l.b16 %v163
    %v443 = vunpack.c.h.b16 %v163
    %v444 = vunpack.c.l.b16 %v164
    %v445 = vunpack.c.h.b16 %v164
    %v446 = vunpack.c.l.b16 %v165
    %v447 = vunpack.c.h.b16 %v165
    %v448 = vunpack.c.l.b16 %v166
    %v449 = vunpack.c.h.b16 %v166
    %v450 = vunpack.c.l.b16 %v167
    %v451 = vunpack.c.h.b16 %v167
    %v452 = vunpack.c.l.b16 %v168
    %v453 = vunpack.c.h.b16 %v168
    %v454 = vunpack.c.l.b16 %v169
    %v455 = vunpack.c.h.b16 %v169
    %v456 = vunpack.c.l.b16 %v170
    %v457 = vunpack.c.h.b16 %v170
    %v458 = vunpack.c.l.b16 %v171
    %v459 = vunpack.c.h.b16 %v171
    %v460 = vunpack.c.l.b16 %v172
    %v461 = vunpack.c.h.b16 %v172
    %v462 = vunpack.c.l.b16 %v173
    %v463 = vunpack.c.h.b16 %v173
    %v464 = vunpack.c.l.b16 %v174
    %v465 = vunpack.c.h.b16 %v174
    %v466 = vunpack.c.l.b16 %v175
    %v467 = vunpack.c.h.b16 %v175
    %v468 = vunpack.c.l.b16 %v176
    %v469 = vunpack.c.h.b16 %v176
    %v470 = vunpack.c.l.b16 %v177
    %v471 = vunpack.c.h.b16 %v177
    %v472 = vunpack.c.l.b16 %v178
    %v473 = vunpack.c.h.b16 %v178
    %v474 = vunpack.c.l.b16 %v179
    %v475 = vunpack.c.h.b16 %v179
    %v476 = vunpack.c.l.b16 %v180
    %v477 = vunpack.c.h.b16 %v180
    %v478 = vunpack.c.l.b16 %v181
    %v479 = vunpack.c.h.b16 %v181
    %v480 = vunpack.c.l.b16 %v182
    %v481 = vunpack.c.h.b16 %v182
    %v482 = vunpack.c.l.b16 %v183
    %v483 = vunpack.c.h.b16 %v183
    %v484 = vunpack.c.l.b16 %v184
    %v485 = vunpack.c.h.b16 %v184
    %v486 = vunpack.c.l.b16 %v185
    %v487 = vunpack.c.h.b16 %v185
    %v488 = vunpack.c.l.b16 %v186
    %v489 = vunpack.c.h.b16 %v186
    %v490 = vunpack.c.l.b16 %v187
    %v491 = vunpack.c.h.b16 %v187
    %v492 = vunpack.c.l.b16 %v188
    %v493 = vunpack.c.h.b16 %v188
    %v494 = vunpack.c.l.b16 %v189
    %v495 = vunpack.c.h.b16 %v189
    %v496 = vunpack.c.l.b16 %v190
    %v497 = vunpack.c.h.b16 %v190
    %v498 = vunpack.c.l.b16 %v191
    %v499 = vunpack.c.h.b16 %v191
    %v500 = vunpack.c.l.b16 %v192
    %v501 = vunpack.c.h.b16 %v192
    %v502 = vunpack.c.l.b16 %v193
    %v503 = vunpack.c.h.b16 %v193
    %v504 = vpack.c.b16 %v316, %v312
    %v505 = vpack.c.b16 %v317, %v313
    %v506 = vpack.c.b16 %v318, %v314
    %v507 = vpack.c.b16 %v319, %v315
    %v508 = vpack.c.b16 %v324, %v320
    %v509 = vpack.c.b16 %v325, %v321
    %v510 = vpack.c.b16 %v326, %v322
    %v511 = vpack.c.b16 %v327, %v323
    %v512 = vpack.c.b16 %v332, %v328
    %v513 = vpack.c.b16 %v333, %v329
    %v514 = vpack.c.b16 %v334, %v330
    %v515 = vpack.c.b16 %v335, %v331
    %v516 = vpack.c.b16 %v340, %v336
    %v517 = vpack.c.b16 %v341, %v337
    %v518 = vpack.c.b16 %v342, %v338
    %v519 = vpack.c.b16 %v343, %v339
    %v520 = vpack.c.b16 %v348, %v344
    %v521 = vpack.c.b16 %v349, %v345
    %v522 = vpack.c.b16 %v350, %v346
    %v523 = vpack.c.b16 %v351, %v347
    %v524 = vpack.c.b16 %v356, %v352
    %v525 = vpack.c.b16 %v357, %v353
    %v526 = vpack.c.b16 %v358, %v354
    %v527 = vpack.c.b16 %v359, %v355
    %v528 = vpack.c.b16 %v364, %v360
    %v529 = vpack.c.b16 %v365, %v361
    %v530 = vpack.c.b16 %v366, %v362
    %v531 = vpack.c.b16 %v367, %v363
    %v532 = vpack.c.b16 %v372, %v368
    %v533 = vpack.c.b16 %v373, %v369
    %v534 = vpack.c.b16 %v374, %v370
    %v535 = vpack.c.b16 %v375, %v371
    %v536 = vpack.c.b16 %v380, %v376
    %v537 = vpack.c.b16 %v381, %v377
    %v538 = vpack.c.b16 %v382, %v378
    %v539 = vpack.c.b16 %v383, %v379
    %v540 = vpack.c.b16 %v388, %v384
    %v541 = vpack.c.b16 %v389, %v385
    %v542 = vpack.c.b16 %v390, %v386
    %v543 = vpack.c.b16 %v391, %v387
    %v544 = vpack.c.b16 %v396, %v392
    %v545 = vpack.c.b16 %v397, %v393
    %v546 = vpack.c.b16 %v398, %v394
    %v547 = vpack.c.b16 %v399, %v395
    %v548 = vpack.c.b16 %v404, %v400
    %v549 = vpack.c.b16 %v405, %v401
    %v550 = vpack.c.b16 %v406, %v402
    %v551 = vpack.c.b16 %v407, %v403
    %v552 = vpack.c.b16 %v412, %v408
    %v553 = vpack.c.b16 %v413, %v409
    %v554 = vpack.c.b16 %v414, %v410
    %v555 = vpack.c.b16 %v415, %v411
    %v556 = vpack.c.b16 %v420, %v416
    %v557 = vpack.c.b16 %v421, %v417
    %v558 = vpack.c.b16 %v422, %v418
    %v559 = vpack.c.b16 %v423, %v419
    %v560 = vpack.c.b16 %v428, %v424
    %v561 = vpack.c.b16 %v429, %v425
    %v562 = vpack.c.b16 %v430, %v426
    %v563 = vpack.c.b16 %v431, %v427
    %v564 = vpack.c.b16 %v436, %v432
    %v565 = vpack.c.b16 %v437, %v433
    %v566 = vpack.c.b16 %v438, %v434
    %v567 = vpack.c.b16 %v439, %v435
    %v568 = vpack.c.b16 %v444, %v440
    %v569 = vpack.c.b16 %v445, %v441
    %v570 = vpack.c.b16 %v446, %v442
    %v571 = vpack.c.b16 %v447, %v443
    %v572 = vpack.c.b16 %v452, %v448
    %v573 = vpack.c.b16 %v453, %v449
    %v574 = vpack.c.b16 %v454, %v450
    %v575 = vpack.c.b16 %v455, %v451
    %v576 = vpack.c.b16 %v460, %v456
    %v577 = vpack.c.b16 %v461, %v457
    %v578 = vpack.c.b16 %v462, %v458
    %v579 = vpack.c.b16 %v463, %v459
    %v580 = vpack.c.b16 %v468, %v464
    %v581 = vpack.c.b16 %v469, %v465
    %v582 = vpack.c.b16 %v470, %v466
    %v583 = vpack.c.b16 %v471, %v467
    %v584 = vpack.c.b16 %v476, %v472
    %v585 = vpack.c.b16 %v477, %v473
    %v586 = vpack.c.b16 %v478, %v474
    %v587 = vpack.c.b16 %v479, %v475
    %v588 = vpack.c.b16 %v484, %v480
    %v589 = vpack.c.b16 %v485, %v481
    %v590 = vpack.c.b16 %v486, %v482
    %v591 = vpack.c.b16 %v487, %v483
    %v592 = vpack.c.b16 %v492, %v488
    %v593 = vpack.c.b16 %v493, %v489
    %v594 = vpack.c.b16 %v494, %v490
    %v595 = vpack.c.b16 %v495, %v491
    %v596 = vpack.c.b16 %v500, %v496
    %v597 = vpack.c.b16 %v501, %v497
    %v598 = vpack.c.b16 %v502, %v498
    %v599 = vpack.c.b16 %v503, %v499
    %696 = vmatprep.subr.bf16.mxu0 %v533
    %697 = vmatpush1.bf16.msra.mxu0 %v532
    %698 = vmatprep.subr.bf16.mxu0 %v529
    %699 = vmatpush1.bf16.msra.mxu0 %v528
    %700 = vmatprep.subr.bf16.mxu0 %v525
    %701 = vmatpush1.bf16.msra.mxu0 %v524
    %702 = vmatprep.subr.bf16.mxu0 %v521
    %703 = vmatpush1.bf16.msra.mxu0 %v520
    %704 = vmatprep.subr.bf16.mxu0 %v517
    %705 = vmatpush1.bf16.msra.mxu0 %v516
    %706 = vmatprep.subr.bf16.mxu0 %v513
    %707 = vmatpush1.bf16.msra.mxu0 %v512
    %708 = vmatprep.subr.bf16.mxu0 %v509
    %709 = vmatpush1.bf16.msra.mxu0 %v508
    %710 = vmatprep.subr.bf16.mxu0 %v505
    %711 = vmatpush1.bf16.msra.mxu0 %v504
    %712 = vmatprep.subr.bf16.mxu0 %v565
    %713 = vmatpush2.bf16.msra.mxu0 %v564
    %714 = vmatprep.subr.bf16.mxu0 %v561
    %715 = vmatpush2.bf16.msra.mxu0 %v560
    %716 = vmatprep.subr.bf16.mxu0 %v557
    %717 = vmatpush2.bf16.msra.mxu0 %v556
    %718 = vmatprep.subr.bf16.mxu0 %v553
    %719 = vmatpush2.bf16.msra.mxu0 %v552
    %720 = vmatprep.subr.bf16.mxu0 %v549
    %721 = vmatpush2.bf16.msra.mxu0 %v548
    %722 = vmatprep.subr.bf16.mxu0 %v545
    %723 = vmatpush2.bf16.msra.mxu0 %v544
    %724 = vmatprep.subr.bf16.mxu0 %v541
    %725 = vmatpush2.bf16.msra.mxu0 %v540
    %726 = vmatprep.subr.bf16.mxu0 %v537
    %727 = vmatpush2.bf16.msra.mxu0 %v536
    %728 = vmatprep.mubr.bf16.mxu0 %v96
    %729 = vmatmul.mubr.bf16.gmra.mxu0 %v95
    %v730 = vpop.f32.mrf.mxu0
    %v731 = vadd.f32 %v199, %v730
    %v732 = vpop.f32.mrf.mxu0
    %v733 = vadd.f32 %v203, %v732
    %v734 = vpop.f32.mrf.mxu0
    %v735 = vpop.f32.mrf.mxu0
    %736 = vdwg.mxu0
    %737 = vmatprep.subr.bf16.mxu0 %v597
    %738 = vmatpush1.bf16.msra.mxu0 %v596
    %739 = vmatprep.subr.bf16.mxu0 %v593
    %740 = vmatpush1.bf16.msra.mxu0 %v592
    %741 = vmatprep.subr.bf16.mxu0 %v589
    %742 = vmatpush1.bf16.msra.mxu0 %v588
    %743 = vmatprep.subr.bf16.mxu0 %v585
    %744 = vmatpush1.bf16.msra.mxu0 %v584
    %745 = vmatprep.subr.bf16.mxu0 %v581
    %746 = vmatpush1.bf16.msra.mxu0 %v580
    %747 = vmatprep.subr.bf16.mxu0 %v577
    %748 = vmatpush1.bf16.msra.mxu0 %v576
    %749 = vmatprep.subr.bf16.mxu0 %v573
    %750 = vmatpush1.bf16.msra.mxu0 %v572
    %751 = vmatprep.subr.bf16.mxu0 %v569
    %752 = vmatpush1.bf16.msra.mxu0 %v568
    %753 = vmatprep.subr.bf16.mxu0 0
    %754 = vmatpush2.bf16.msra.mxu0 0
    %755 = vmatprep.subr.bf16.mxu0 0
    %756 = vmatpush2.bf16.msra.mxu0 0
    %757 = vmatprep.subr.bf16.mxu0 0
    %758 = vmatpush2.bf16.msra.mxu0 0
    %759 = vmatprep.subr.bf16.mxu0 0
    %760 = vmatpush2.bf16.msra.mxu0 0
    %761 = vmatprep.subr.bf16.mxu0 0
    %762 = vmatpush2.bf16.msra.mxu0 0
    %763 = vmatprep.subr.bf16.mxu0 0
    %764 = vmatpush2.bf16.msra.mxu0 0
    %765 = vmatprep.subr.bf16.mxu0 0
    %766 = vmatpush2.bf16.msra.mxu0 0
    %767 = vmatprep.subr.bf16.mxu0 0
    %768 = vmatpush2.bf16.msra.mxu0 0
    %769 = vmatprep.mubr.bf16.mxu0 0
    %770 = vmatmul.mubr.bf16.gmra.mxu0 %v97
    %v771 = vpop.f32.mrf.mxu0
    %v772 = vadd.f32 %v731, %v771
    %v773 = vpop.f32.mrf.mxu0
    %v774 = vadd.f32 %v733, %v773
    %v775 = vpop.f32.mrf.mxu0
    %v776 = vpop.f32.mrf.mxu0
    %777 = vdwg.mxu0
    %778 = vmatprep.subr.bf16.mxu0 %v535
    %779 = vmatpush1.bf16.msra.mxu0 %v534
    %780 = vmatprep.subr.bf16.mxu0 %v531
    %781 = vmatpush1.bf16.msra.mxu0 %v530
    %782 = vmatprep.subr.bf16.mxu0 %v527
    %783 = vmatpush1.bf16.msra.mxu0 %v526
    %784 = vmatprep.subr.bf16.mxu0 %v523
    %785 = vmatpush1.bf16.msra.mxu0 %v522
    %786 = vmatprep.subr.bf16.mxu0 %v519
    %787 = vmatpush1.bf16.msra.mxu0 %v518
    %788 = vmatprep.subr.bf16.mxu0 %v515
    %789 = vmatpush1.bf16.msra.mxu0 %v514
    %790 = vmatprep.subr.bf16.mxu0 %v511
    %791 = vmatpush1.bf16.msra.mxu0 %v510
    %792 = vmatprep.subr.bf16.mxu0 %v507
    %793 = vmatpush1.bf16.msra.mxu0 %v506
    %794 = vmatprep.subr.bf16.mxu0 %v567
    %795 = vmatpush2.bf16.msra.mxu0 %v566
    %796 = vmatprep.subr.bf16.mxu0 %v563
    %797 = vmatpush2.bf16.msra.mxu0 %v562
    %798 = vmatprep.subr.bf16.mxu0 %v559
    %799 = vmatpush2.bf16.msra.mxu0 %v558
    %800 = vmatprep.subr.bf16.mxu0 %v555
    %801 = vmatpush2.bf16.msra.mxu0 %v554
    %802 = vmatprep.subr.bf16.mxu0 %v551
    %803 = vmatpush2.bf16.msra.mxu0 %v550
    %804 = vmatprep.subr.bf16.mxu0 %v547
    %805 = vmatpush2.bf16.msra.mxu0 %v546
    %806 = vmatprep.subr.bf16.mxu0 %v543
    %807 = vmatpush2.bf16.msra.mxu0 %v542
    %808 = vmatprep.subr.bf16.mxu0 %v539
    %809 = vmatpush2.bf16.msra.mxu0 %v538
    %810 = vmatprep.mubr.bf16.mxu0 %v96
    %811 = vmatmul.mubr.bf16.gmra.mxu0 %v95
    %v812 = vpop.f32.mrf.mxu0
    %v813 = vadd.f32 %v207, %v812
    %v814 = vpop.f32.mrf.mxu0
    %v815 = vadd.f32 %v211, %v814
    %v816 = vpop.f32.mrf.mxu0
    %v817 = vpop.f32.mrf.mxu0
    %818 = vdwg.mxu0
    %819 = vmatprep.subr.bf16.mxu0 %v599
    %820 = vmatpush1.bf16.msra.mxu0 %v598
    %821 = vmatprep.subr.bf16.mxu0 %v595
    %822 = vmatpush1.bf16.msra.mxu0 %v594
    %823 = vmatprep.subr.bf16.mxu0 %v591
    %824 = vmatpush1.bf16.msra.mxu0 %v590
    %825 = vmatprep.subr.bf16.mxu0 %v587
    %826 = vmatpush1.bf16.msra.mxu0 %v586
    %827 = vmatprep.subr.bf16.mxu0 %v583
    %828 = vmatpush1.bf16.msra.mxu0 %v582
    %829 = vmatprep.subr.bf16.mxu0 %v579
    %830 = vmatpush1.bf16.msra.mxu0 %v578
    %831 = vmatprep.subr.bf16.mxu0 %v575
    %832 = vmatpush1.bf16.msra.mxu0 %v574
    %833 = vmatprep.subr.bf16.mxu0 %v571
    %834 = vmatpush1.bf16.msra.mxu0 %v570
    %835 = vmatprep.subr.bf16.mxu0 0
    %836 = vmatpush2.bf16.msra.mxu0 0
    %837 = vmatprep.subr.bf16.mxu0 0
    %838 = vmatpush2.bf16.msra.mxu0 0
    %839 = vmatprep.subr.bf16.mxu0 0
    %840 = vmatpush2.bf16.msra.mxu0 0
    %841 = vmatprep.subr.bf16.mxu0 0
    %842 = vmatpush2.bf16.msra.mxu0 0
    %843 = vmatprep.subr.bf16.mxu0 0
    %844 = vmatpush2.bf16.msra.mxu0 0
    %845 = vmatprep.subr.bf16.mxu0 0
    %846 = vmatpush2.bf16.msra.mxu0 0
    %847 = vmatprep.subr.bf16.mxu0 0
    %848 = vmatpush2.bf16.msra.mxu0 0
    %849 = vmatprep.subr.bf16.mxu0 0
    %850 = vmatpush2.bf16.msra.mxu0 0
    %851 = vmatprep.mubr.bf16.mxu0 0
    %852 = vmatmul.mubr.bf16.gmra.mxu0 %v97
    %v853 = vpop.f32.mrf.mxu0
    %v854 = vadd.f32 %v813, %v853
    %v855 = vpop.f32.mrf.mxu0
    %v856 = vadd.f32 %v815, %v855
    %v857 = vpop.f32.mrf.mxu0
    %v858 = vpop.f32.mrf.mxu0
    %859 = vdwg.mxu0
    %v860 = vmax.f32 %v772, 0.0
    %v861 = vmax.f32 %v774, 0.0
    %v862 = vmax.f32 %v854, 0.0
    %v863 = vmax.f32 %v856, 0.0
    %v864 = vpack.c.bf16 %v860, %v860
    %v865 = vpack.c.bf16 %v861, %v861
    %v866 = vpack.c.bf16 %v862, %v862
    %v867 = vpack.c.bf16 %v863, %v863
    %v868 = vld [vmem:[#allocation8] sm:$0xff]
    %v869 = vld [vmem:[#allocation8 + $0x8] sm:$0xf]
    %v870 = vld [vmem:[#allocation8 + $0xc] sm:$0xff]
    %v871 = vld [vmem:[#allocation8 + $0x14] sm:$0xf]
    %v872 = vld [vmem:[#allocation8 + $0x18] sm:$0xff]
    %v873 = vld [vmem:[#allocation8 + $0x20] sm:$0xf]
    %v874 = vld [vmem:[#allocation8 + $0x24] sm:$0xff]
    %v875 = vld [vmem:[#allocation8 + $0x2c] sm:$0xf]
    %v876 = vld [vmem:[#allocation8 + $0x30] sm:$0xff]
    %v877 = vld [vmem:[#allocation8 + $0x38] sm:$0xf]
    %v878 = vld [vmem:[#allocation8 + $0x3c] sm:$0xff]
    %v879 = vld [vmem:[#allocation8 + $0x44] sm:$0xf]
    %v880 = vld [vmem:[#allocation8 + $0x48] sm:$0xff]
    %v881 = vld [vmem:[#allocation8 + $0x50] sm:$0xf]
    %v882 = vld [vmem:[#allocation8 + $0x54] sm:$0xff]
    %v883 = vld [vmem:[#allocation8 + $0x5c] sm:$0xf]
    %v884 = vld [vmem:[#allocation8 + $0x60] sm:$0xff]
    %v885 = vld [vmem:[#allocation8 + $0x68] sm:$0xf]
    %v886 = vld [vmem:[#allocation8 + $0x6c] sm:$0xff]
    %v887 = vld [vmem:[#allocation8 + $0x74] sm:$0xf]
    %v888 = vld [vmem:[#allocation8 + $0x78] sm:$0xff]
    %v889 = vld [vmem:[#allocation8 + $0x80] sm:$0xf]
    %v890 = vld [vmem:[#allocation8 + $0x84] sm:$0xff]
    %v891 = vld [vmem:[#allocation8 + $0x8c] sm:$0xf]
    %v892 = vld [vmem:[#allocation8 + $0x90] sm:$0xff]
    %v893 = vld [vmem:[#allocation8 + $0x98] sm:$0xf]
    %v894 = vld [vmem:[#allocation8 + $0x9c] sm:$0xff]
    %v895 = vld [vmem:[#allocation8 + $0xa4] sm:$0xf]
    %v896 = vld [vmem:[#allocation8 + $0xa8] sm:$0xff]
    %v897 = vld [vmem:[#allocation8 + $0xb0] sm:$0xf]
    %v898 = vld [vmem:[#allocation8 + $0xb4] sm:$0xff]
    %v899 = vld [vmem:[#allocation8 + $0xbc] sm:$0xf]
    %v900 = vld [vmem:[#allocation8 + $0xc0] sm:$0xff]
    %v901 = vld [vmem:[#allocation8 + $0xc8] sm:$0xf]
    %v902 = vld [vmem:[#allocation8 + $0xcc] sm:$0xff]
    %v903 = vld [vmem:[#allocation8 + $0xd4] sm:$0xf]
    %v904 = vld [vmem:[#allocation8 + $0xd8] sm:$0xff]
    %v905 = vld [vmem:[#allocation8 + $0xe0] sm:$0xf]
    %v906 = vld [vmem:[#allocation8 + $0xe4] sm:$0xff]
    %v907 = vld [vmem:[#allocation8 + $0xec] sm:$0xf]
    %v908 = vld [vmem:[#allocation8 + $0xf0] sm:$0xff]
    %v909 = vld [vmem:[#allocation8 + $0xf8] sm:$0xf]
    %v910 = vld [vmem:[#allocation8 + $0xfc] sm:$0xff]
    %v911 = vld [vmem:[#allocation8 + $0x104] sm:$0xf]
    %v912 = vld [vmem:[#allocation8 + $0x108] sm:$0xff]
    %v913 = vld [vmem:[#allocation8 + $0x110] sm:$0xf]
    %v914 = vld [vmem:[#allocation8 + $0x114] sm:$0xff]
    %v915 = vld [vmem:[#allocation8 + $0x11c] sm:$0xf]
    %v916 = vld [vmem:[#allocation8 + $0x120] sm:$0xff]
    %v917 = vld [vmem:[#allocation8 + $0x128] sm:$0xf]
    %v918 = vld [vmem:[#allocation8 + $0x12c] sm:$0xff]
    %v919 = vld [vmem:[#allocation8 + $0x134] sm:$0xf]
    %v920 = vld [vmem:[#allocation8 + $0x138] sm:$0xff]
    %v921 = vld [vmem:[#allocation8 + $0x140] sm:$0xf]
    %v922 = vld [vmem:[#allocation8 + $0x144] sm:$0xff]
    %v923 = vld [vmem:[#allocation8 + $0x14c] sm:$0xf]
    %v924 = vld [vmem:[#allocation8 + $0x150] sm:$0xff]
    %v925 = vld [vmem:[#allocation8 + $0x158] sm:$0xf]
    %v926 = vld [vmem:[#allocation8 + $0x15c] sm:$0xff]
    %v927 = vld [vmem:[#allocation8 + $0x164] sm:$0xf]
    %v928 = vld [vmem:[#allocation8 + $0x168] sm:$0xff]
    %v929 = vld [vmem:[#allocation8 + $0x170] sm:$0xf]
    %v930 = vld [vmem:[#allocation8 + $0x174] sm:$0xff]
    %v931 = vld [vmem:[#allocation8 + $0x17c] sm:$0xf]
    %v932 = vld [vmem:[#allocation8 + $0x180] sm:$0xff]
    %v933 = vld [vmem:[#allocation8 + $0x188] sm:$0xf]
    %v934 = vld [vmem:[#allocation8 + $0x18c] sm:$0xff]
    %v935 = vld [vmem:[#allocation8 + $0x194] sm:$0xf]
    %v936 = vld [vmem:[#allocation8 + $0x198] sm:$0xff]
    %v937 = vld [vmem:[#allocation8 + $0x1a0] sm:$0xf]
    %v938 = vld [vmem:[#allocation8 + $0x1a4] sm:$0xff]
    %v939 = vld [vmem:[#allocation8 + $0x1ac] sm:$0xf]
    %v940 = vld [vmem:[#allocation8 + $0x1b0] sm:$0xff]
    %v941 = vld [vmem:[#allocation8 + $0x1b8] sm:$0xf]
    %v942 = vld [vmem:[#allocation8 + $0x1bc] sm:$0xff]
    %v943 = vld [vmem:[#allocation8 + $0x1c4] sm:$0xf]
    %v944 = vld [vmem:[#allocation8 + $0x1c8] sm:$0xff]
    %v945 = vld [vmem:[#allocation8 + $0x1d0] sm:$0xf]
    %v946 = vld [vmem:[#allocation8 + $0x1d4] sm:$0xff]
    %v947 = vld [vmem:[#allocation8 + $0x1dc] sm:$0xf]
    %v948 = vld [vmem:[#allocation8 + $0x1e0] sm:$0xff]
    %v949 = vld [vmem:[#allocation8 + $0x1e8] sm:$0xf]
    %v950 = vld [vmem:[#allocation8 + $0x1ec] sm:$0xff]
    %v951 = vld [vmem:[#allocation8 + $0x1f4] sm:$0xf]
    %v952 = vld [vmem:[#allocation8 + $0x1f8] sm:$0xff]
    %v953 = vld [vmem:[#allocation8 + $0x200] sm:$0xf]
    %v954 = vld [vmem:[#allocation8 + $0x204] sm:$0xff]
    %v955 = vld [vmem:[#allocation8 + $0x20c] sm:$0xf]
    %v956 = vld [vmem:[#allocation8 + $0x210] sm:$0xff]
    %v957 = vld [vmem:[#allocation8 + $0x218] sm:$0xf]
    %v958 = vld [vmem:[#allocation8 + $0x21c] sm:$0xff]
    %v959 = vld [vmem:[#allocation8 + $0x224] sm:$0xf]
    %v960 = vld [vmem:[#allocation8 + $0x228] sm:$0xff]
    %v961 = vld [vmem:[#allocation8 + $0x230] sm:$0xf]
    %v962 = vld [vmem:[#allocation8 + $0x234] sm:$0xff]
    %v963 = vld [vmem:[#allocation8 + $0x23c] sm:$0xf]
    %v964 = vld [vmem:[#allocation8 + $0x240] sm:$0xff]
    %v965 = vld [vmem:[#allocation8 + $0x248] sm:$0xf]
    %v966 = vld [vmem:[#allocation8 + $0x24c] sm:$0xff]
    %v967 = vld [vmem:[#allocation8 + $0x254] sm:$0xf]
    %v968 = vld [vmem:[#allocation8 + $0x258] sm:$0xff]
    %v969 = vld [vmem:[#allocation8 + $0x260] sm:$0xf]
    %v970 = vld [vmem:[#allocation8 + $0x264] sm:$0xff]
    %v971 = vld [vmem:[#allocation8 + $0x26c] sm:$0xf]
    %v972 = vld [vmem:[#allocation8 + $0x270] sm:$0xff]
    %v973 = vld [vmem:[#allocation8 + $0x278] sm:$0xf]
    %v974 = vld [vmem:[#allocation8 + $0x27c] sm:$0xff]
    %v975 = vld [vmem:[#allocation8 + $0x284] sm:$0xf]
    %v976 = vld [vmem:[#allocation8 + $0x288] sm:$0xff]
    %v977 = vld [vmem:[#allocation8 + $0x290] sm:$0xf]
    %v978 = vld [vmem:[#allocation8 + $0x294] sm:$0xff]
    %v979 = vld [vmem:[#allocation8 + $0x29c] sm:$0xf]
    %v980 = vld [vmem:[#allocation8 + $0x2a0] sm:$0xff]
    %v981 = vld [vmem:[#allocation8 + $0x2a8] sm:$0xf]
    %v982 = vld [vmem:[#allocation8 + $0x2ac] sm:$0xff]
    %v983 = vld [vmem:[#allocation8 + $0x2b4] sm:$0xf]
    %v984 = vld [vmem:[#allocation8 + $0x2b8] sm:$0xff]
    %v985 = vld [vmem:[#allocation8 + $0x2c0] sm:$0xf]
    %v986 = vld [vmem:[#allocation8 + $0x2c4] sm:$0xff]
    %v987 = vld [vmem:[#allocation8 + $0x2cc] sm:$0xf]
    %v988 = vld [vmem:[#allocation8 + $0x2d0] sm:$0xff]
    %v989 = vld [vmem:[#allocation8 + $0x2d8] sm:$0xf]
    %v990 = vld [vmem:[#allocation8 + $0x2dc] sm:$0xff]
    %v991 = vld [vmem:[#allocation8 + $0x2e4] sm:$0xf]
    %v992 = vld [vmem:[#allocation8 + $0x2e8] sm:$0xff]
    %v993 = vld [vmem:[#allocation8 + $0x2f0] sm:$0xf]
    %v994 = vld [vmem:[#allocation8 + $0x2f4] sm:$0xff]
    %v995 = vld [vmem:[#allocation8 + $0x2fc] sm:$0xf]
    %v996 = vld [vmem:[%s4] sm:$0x7]
    %v998 = vlaneseq
    %v999 = vshrl.u32 %v998, 7
    %v1000 = vsub.s32 0, %v999
    %v1001 = vrot.slane %v996, %v1000
    %v1002 = vlaneseq
    %v1003 = vshrl.u32 %v1002, 7
    %v1004 = vsub.s32 1, %v1003
    %v1005 = vrot.slane %v996, %v1004
    %v1006 = vlaneseq
    %v1007 = vshrl.u32 %v1006, 7
    %v1008 = vsub.s32 2, %v1007
    %v1009 = vrot.slane %v996, %v1008
    %v1141 = vunpack.c.l.b16 %v868
    %v1142 = vunpack.c.h.b16 %v868
    %v1143 = vunpack.c.l.b16 %v869
    %v1144 = vunpack.c.l.b16 %v870
    %v1145 = vunpack.c.h.b16 %v870
    %v1146 = vunpack.c.l.b16 %v871
    %v1147 = vunpack.c.l.b16 %v872
    %v1148 = vunpack.c.h.b16 %v872
    %v1149 = vunpack.c.l.b16 %v873
    %v1150 = vunpack.c.l.b16 %v874
    %v1151 = vunpack.c.h.b16 %v874
    %v1152 = vunpack.c.l.b16 %v875
    %v1153 = vunpack.c.l.b16 %v876
    %v1154 = vunpack.c.h.b16 %v876
    %v1155 = vunpack.c.l.b16 %v877
    %v1156 = vunpack.c.l.b16 %v878
    %v1157 = vunpack.c.h.b16 %v878
    %v1158 = vunpack.c.l.b16 %v879
    %v1159 = vunpack.c.l.b16 %v880
    %v1160 = vunpack.c.h.b16 %v880
    %v1161 = vunpack.c.l.b16 %v881
    %v1162 = vunpack.c.l.b16 %v882
    %v1163 = vunpack.c.h.b16 %v882
    %v1164 = vunpack.c.l.b16 %v883
    %v1165 = vunpack.c.l.b16 %v884
    %v1166 = vunpack.c.h.b16 %v884
    %v1167 = vunpack.c.l.b16 %v885
    %v1168 = vunpack.c.l.b16 %v886
    %v1169 = vunpack.c.h.b16 %v886
    %v1170 = vunpack.c.l.b16 %v887
    %v1171 = vunpack.c.l.b16 %v888
    %v1172 = vunpack.c.h.b16 %v888
    %v1173 = vunpack.c.l.b16 %v889
    %v1174 = vunpack.c.l.b16 %v890
    %v1175 = vunpack.c.h.b16 %v890
    %v1176 = vunpack.c.l.b16 %v891
    %v1177 = vunpack.c.l.b16 %v892
    %v1178 = vunpack.c.h.b16 %v892
    %v1179 = vunpack.c.l.b16 %v893
    %v1180 = vunpack.c.l.b16 %v894
    %v1181 = vunpack.c.h.b16 %v894
    %v1182 = vunpack.c.l.b16 %v895
    %v1183 = vunpack.c.l.b16 %v896
    %v1184 = vunpack.c.h.b16 %v896
    %v1185 = vunpack.c.l.b16 %v897
    %v1186 = vunpack.c.l.b16 %v898
    %v1187 = vunpack.c.h.b16 %v898
    %v1188 = vunpack.c.l.b16 %v899
    %v1189 = vunpack.c.l.b16 %v900
    %v1190 = vunpack.c.h.b16 %v900
    %v1191 = vunpack.c.l.b16 %v901
    %v1192 = vunpack.c.l.b16 %v902
    %v1193 = vunpack.c.h.b16 %v902
    %v1194 = vunpack.c.l.b16 %v903
    %v1195 = vunpack.c.l.b16 %v904
    %v1196 = vunpack.c.h.b16 %v904
    %v1197 = vunpack.c.l.b16 %v905
    %v1198 = vunpack.c.l.b16 %v906
    %v1199 = vunpack.c.h.b16 %v906
    %v1200 = vunpack.c.l.b16 %v907
    %v1201 = vunpack.c.l.b16 %v908
    %v1202 = vunpack.c.h.b16 %v908
    %v1203 = vunpack.c.l.b16 %v909
    %v1204 = vunpack.c.l.b16 %v910
    %v1205 = vunpack.c.h.b16 %v910
    %v1206 = vunpack.c.l.b16 %v911
    %v1207 = vunpack.c.l.b16 %v912
    %v1208 = vunpack.c.h.b16 %v912
    %v1209 = vunpack.c.l.b16 %v913
    %v1210 = vunpack.c.l.b16 %v914
    %v1211 = vunpack.c.h.b16 %v914
    %v1212 = vunpack.c.l.b16 %v915
    %v1213 = vunpack.c.l.b16 %v916
    %v1214 = vunpack.c.h.b16 %v916
    %v1215 = vunpack.c.l.b16 %v917
    %v1216 = vunpack.c.l.b16 %v918
    %v1217 = vunpack.c.h.b16 %v918
    %v1218 = vunpack.c.l.b16 %v919
    %v1219 = vunpack.c.l.b16 %v920
    %v1220 = vunpack.c.h.b16 %v920
    %v1221 = vunpack.c.l.b16 %v921
    %v1222 = vunpack.c.l.b16 %v922
    %v1223 = vunpack.c.h.b16 %v922
    %v1224 = vunpack.c.l.b16 %v923
    %v1225 = vunpack.c.l.b16 %v924
    %v1226 = vunpack.c.h.b16 %v924
    %v1227 = vunpack.c.l.b16 %v925
    %v1228 = vunpack.c.l.b16 %v926
    %v1229 = vunpack.c.h.b16 %v926
    %v1230 = vunpack.c.l.b16 %v927
    %v1231 = vunpack.c.l.b16 %v928
    %v1232 = vunpack.c.h.b16 %v928
    %v1233 = vunpack.c.l.b16 %v929
    %v1234 = vunpack.c.l.b16 %v930
    %v1235 = vunpack.c.h.b16 %v930
    %v1236 = vunpack.c.l.b16 %v931
    %v1237 = vunpack.c.l.b16 %v932
    %v1238 = vunpack.c.h.b16 %v932
    %v1239 = vunpack.c.l.b16 %v933
    %v1240 = vunpack.c.l.b16 %v934
    %v1241 = vunpack.c.h.b16 %v934
    %v1242 = vunpack.c.l.b16 %v935
    %v1243 = vunpack.c.l.b16 %v936
    %v1244 = vunpack.c.h.b16 %v936
    %v1245 = vunpack.c.l.b16 %v937
    %v1246 = vunpack.c.l.b16 %v938
    %v1247 = vunpack.c.h.b16 %v938
    %v1248 = vunpack.c.l.b16 %v939
    %v1249 = vunpack.c.l.b16 %v940
    %v1250 = vunpack.c.h.b16 %v940
    %v1251 = vunpack.c.l.b16 %v941
    %v1252 = vunpack.c.l.b16 %v942
    %v1253 = vunpack.c.h.b16 %v942
    %v1254 = vunpack.c.l.b16 %v943
    %v1255 = vunpack.c.l.b16 %v944
    %v1256 = vunpack.c.h.b16 %v944
    %v1257 = vunpack.c.l.b16 %v945
    %v1258 = vunpack.c.l.b16 %v946
    %v1259 = vunpack.c.h.b16 %v946
    %v1260 = vunpack.c.l.b16 %v947
    %v1261 = vunpack.c.l.b16 %v948
    %v1262 = vunpack.c.h.b16 %v948
    %v1263 = vunpack.c.l.b16 %v949
    %v1264 = vunpack.c.l.b16 %v950
    %v1265 = vunpack.c.h.b16 %v950
    %v1266 = vunpack.c.l.b16 %v951
    %v1267 = vunpack.c.l.b16 %v952
    %v1268 = vunpack.c.h.b16 %v952
    %v1269 = vunpack.c.l.b16 %v953
    %v1270 = vunpack.c.l.b16 %v954
    %v1271 = vunpack.c.h.b16 %v954
    %v1272 = vunpack.c.l.b16 %v955
    %v1273 = vunpack.c.l.b16 %v956
    %v1274 = vunpack.c.h.b16 %v956
    %v1275 = vunpack.c.l.b16 %v957
    %v1276 = vunpack.c.l.b16 %v958
    %v1277 = vunpack.c.h.b16 %v958
    %v1278 = vunpack.c.l.b16 %v959
    %v1279 = vunpack.c.l.b16 %v960
    %v1280 = vunpack.c.h.b16 %v960
    %v1281 = vunpack.c.l.b16 %v961
    %v1282 = vunpack.c.l.b16 %v962
    %v1283 = vunpack.c.h.b16 %v962
    %v1284 = vunpack.c.l.b16 %v963
    %v1285 = vunpack.c.l.b16 %v964
    %v1286 = vunpack.c.h.b16 %v964
    %v1287 = vunpack.c.l.b16 %v965
    %v1288 = vunpack.c.l.b16 %v966
    %v1289 = vunpack.c.h.b16 %v966
    %v1290 = vunpack.c.l.b16 %v967
    %v1291 = vunpack.c.l.b16 %v968
    %v1292 = vunpack.c.h.b16 %v968
    %v1293 = vunpack.c.l.b16 %v969
    %v1294 = vunpack.c.l.b16 %v970
    %v1295 = vunpack.c.h.b16 %v970
    %v1296 = vunpack.c.l.b16 %v971
    %v1297 = vunpack.c.l.b16 %v972
    %v1298 = vunpack.c.h.b16 %v972
    %v1299 = vunpack.c.l.b16 %v973
    %v1300 = vunpack.c.l.b16 %v974
    %v1301 = vunpack.c.h.b16 %v974
    %v1302 = vunpack.c.l.b16 %v975
    %v1303 = vunpack.c.l.b16 %v976
    %v1304 = vunpack.c.h.b16 %v976
    %v1305 = vunpack.c.l.b16 %v977
    %v1306 = vunpack.c.l.b16 %v978
    %v1307 = vunpack.c.h.b16 %v978
    %v1308 = vunpack.c.l.b16 %v979
    %v1309 = vunpack.c.l.b16 %v980
    %v1310 = vunpack.c.h.b16 %v980
    %v1311 = vunpack.c.l.b16 %v981
    %v1312 = vunpack.c.l.b16 %v982
    %v1313 = vunpack.c.h.b16 %v982
    %v1314 = vunpack.c.l.b16 %v983
    %v1315 = vunpack.c.l.b16 %v984
    %v1316 = vunpack.c.h.b16 %v984
    %v1317 = vunpack.c.l.b16 %v985
    %v1318 = vunpack.c.l.b16 %v986
    %v1319 = vunpack.c.h.b16 %v986
    %v1320 = vunpack.c.l.b16 %v987
    %v1321 = vunpack.c.l.b16 %v988
    %v1322 = vunpack.c.h.b16 %v988
    %v1323 = vunpack.c.l.b16 %v989
    %v1324 = vunpack.c.l.b16 %v990
    %v1325 = vunpack.c.h.b16 %v990
    %v1326 = vunpack.c.l.b16 %v991
    %v1327 = vunpack.c.l.b16 %v992
    %v1328 = vunpack.c.h.b16 %v992
    %v1329 = vunpack.c.l.b16 %v993
    %v1330 = vunpack.c.l.b16 %v994
    %v1331 = vunpack.c.h.b16 %v994
    %v1332 = vunpack.c.l.b16 %v995
    %v1333 = vpack.c.b16 %v1144, %v1141
    %v1334 = vpack.c.b16 %v1145, %v1142
    %v1335 = vpack.c.b16 %v1146, %v1143
    %v1336 = vpack.c.b16 %v1150, %v1147
    %v1337 = vpack.c.b16 %v1151, %v1148
    %v1338 = vpack.c.b16 %v1152, %v1149
    %v1339 = vpack.c.b16 %v1156, %v1153
    %v1340 = vpack.c.b16 %v1157, %v1154
    %v1341 = vpack.c.b16 %v1158, %v1155
    %v1342 = vpack.c.b16 %v1162, %v1159
    %v1343 = vpack.c.b16 %v1163, %v1160
    %v1344 = vpack.c.b16 %v1164, %v1161
    %v1345 = vpack.c.b16 %v1168, %v1165
    %v1346 = vpack.c.b16 %v1169, %v1166
    %v1347 = vpack.c.b16 %v1170, %v1167
    %v1348 = vpack.c.b16 %v1174, %v1171
    %v1349 = vpack.c.b16 %v1175, %v1172
    %v1350 = vpack.c.b16 %v1176, %v1173
    %v1351 = vpack.c.b16 %v1180, %v1177
    %v1352 = vpack.c.b16 %v1181, %v1178
    %v1353 = vpack.c.b16 %v1182, %v1179
    %v1354 = vpack.c.b16 %v1186, %v1183
    %v1355 = vpack.c.b16 %v1187, %v1184
    %v1356 = vpack.c.b16 %v1188, %v1185
    %v1357 = vpack.c.b16 %v1192, %v1189
    %v1358 = vpack.c.b16 %v1193, %v1190
    %v1359 = vpack.c.b16 %v1194, %v1191
    %v1360 = vpack.c.b16 %v1198, %v1195
    %v1361 = vpack.c.b16 %v1199, %v1196
    %v1362 = vpack.c.b16 %v1200, %v1197
    %v1363 = vpack.c.b16 %v1204, %v1201
    %v1364 = vpack.c.b16 %v1205, %v1202
    %v1365 = vpack.c.b16 %v1206, %v1203
    %v1366 = vpack.c.b16 %v1210, %v1207
    %v1367 = vpack.c.b16 %v1211, %v1208
    %v1368 = vpack.c.b16 %v1212, %v1209
    %v1369 = vpack.c.b16 %v1216, %v1213
    %v1370 = vpack.c.b16 %v1217, %v1214
    %v1371 = vpack.c.b16 %v1218, %v1215
    %v1372 = vpack.c.b16 %v1222, %v1219
    %v1373 = vpack.c.b16 %v1223, %v1220
    %v1374 = vpack.c.b16 %v1224, %v1221
    %v1375 = vpack.c.b16 %v1228, %v1225
    %v1376 = vpack.c.b16 %v1229, %v1226
    %v1377 = vpack.c.b16 %v1230, %v1227
    %v1378 = vpack.c.b16 %v1234, %v1231
    %v1379 = vpack.c.b16 %v1235, %v1232
    %v1380 = vpack.c.b16 %v1236, %v1233
    %v1381 = vpack.c.b16 %v1240, %v1237
    %v1382 = vpack.c.b16 %v1241, %v1238
    %v1383 = vpack.c.b16 %v1242, %v1239
    %v1384 = vpack.c.b16 %v1246, %v1243
    %v1385 = vpack.c.b16 %v1247, %v1244
    %v1386 = vpack.c.b16 %v1248, %v1245
    %v1387 = vpack.c.b16 %v1252, %v1249
    %v1388 = vpack.c.b16 %v1253, %v1250
    %v1389 = vpack.c.b16 %v1254, %v1251
    %v1390 = vpack.c.b16 %v1258, %v1255
    %v1391 = vpack.c.b16 %v1259, %v1256
    %v1392 = vpack.c.b16 %v1260, %v1257
    %v1393 = vpack.c.b16 %v1264, %v1261
    %v1394 = vpack.c.b16 %v1265, %v1262
    %v1395 = vpack.c.b16 %v1266, %v1263
    %v1396 = vpack.c.b16 %v1270, %v1267
    %v1397 = vpack.c.b16 %v1271, %v1268
    %v1398 = vpack.c.b16 %v1272, %v1269
    %v1399 = vpack.c.b16 %v1276, %v1273
    %v1400 = vpack.c.b16 %v1277, %v1274
    %v1401 = vpack.c.b16 %v1278, %v1275
    %v1402 = vpack.c.b16 %v1282, %v1279
    %v1403 = vpack.c.b16 %v1283, %v1280
    %v1404 = vpack.c.b16 %v1284, %v1281
    %v1405 = vpack.c.b16 %v1288, %v1285
    %v1406 = vpack.c.b16 %v1289, %v1286
    %v1407 = vpack.c.b16 %v1290, %v1287
    %v1408 = vpack.c.b16 %v1294, %v1291
    %v1409 = vpack.c.b16 %v1295, %v1292
    %v1410 = vpack.c.b16 %v1296, %v1293
    %v1411 = vpack.c.b16 %v1300, %v1297
    %v1412 = vpack.c.b16 %v1301, %v1298
    %v1413 = vpack.c.b16 %v1302, %v1299
    %v1414 = vpack.c.b16 %v1306, %v1303
    %v1415 = vpack.c.b16 %v1307, %v1304
    %v1416 = vpack.c.b16 %v1308, %v1305
    %v1417 = vpack.c.b16 %v1312, %v1309
    %v1418 = vpack.c.b16 %v1313, %v1310
    %v1419 = vpack.c.b16 %v1314, %v1311
    %v1420 = vpack.c.b16 %v1318, %v1315
    %v1421 = vpack.c.b16 %v1319, %v1316
    %v1422 = vpack.c.b16 %v1320, %v1317
    %v1423 = vpack.c.b16 %v1324, %v1321
    %v1424 = vpack.c.b16 %v1325, %v1322
    %v1425 = vpack.c.b16 %v1326, %v1323
    %v1426 = vpack.c.b16 %v1330, %v1327
    %v1427 = vpack.c.b16 %v1331, %v1328
    %v1428 = vpack.c.b16 %v1332, %v1329
    %1525 = vmatprep.subr.bf16.mxu0 %v1355
    %1526 = vmatpush1.bf16.msra.mxu0 %v1354
    %1527 = vmatprep.subr.bf16.mxu0 %v1352
    %1528 = vmatpush1.bf16.msra.mxu0 %v1351
    %1529 = vmatprep.subr.bf16.mxu0 %v1349
    %1530 = vmatpush1.bf16.msra.mxu0 %v1348
    %1531 = vmatprep.subr.bf16.mxu0 %v1346
    %1532 = vmatpush1.bf16.msra.mxu0 %v1345
    %1533 = vmatprep.subr.bf16.mxu0 %v1343
    %1534 = vmatpush1.bf16.msra.mxu0 %v1342
    %1535 = vmatprep.subr.bf16.mxu0 %v1340
    %1536 = vmatpush1.bf16.msra.mxu0 %v1339
    %1537 = vmatprep.subr.bf16.mxu0 %v1337
    %1538 = vmatpush1.bf16.msra.mxu0 %v1336
    %1539 = vmatprep.subr.bf16.mxu0 %v1334
    %1540 = vmatpush1.bf16.msra.mxu0 %v1333
    %1541 = vmatprep.subr.bf16.mxu0 %v1379
    %1542 = vmatpush2.bf16.msra.mxu0 %v1378
    %1543 = vmatprep.subr.bf16.mxu0 %v1376
    %1544 = vmatpush2.bf16.msra.mxu0 %v1375
    %1545 = vmatprep.subr.bf16.mxu0 %v1373
    %1546 = vmatpush2.bf16.msra.mxu0 %v1372
    %1547 = vmatprep.subr.bf16.mxu0 %v1370
    %1548 = vmatpush2.bf16.msra.mxu0 %v1369
    %1549 = vmatprep.subr.bf16.mxu0 %v1367
    %1550 = vmatpush2.bf16.msra.mxu0 %v1366
    %1551 = vmatprep.subr.bf16.mxu0 %v1364
    %1552 = vmatpush2.bf16.msra.mxu0 %v1363
    %1553 = vmatprep.subr.bf16.mxu0 %v1361
    %1554 = vmatpush2.bf16.msra.mxu0 %v1360
    %1555 = vmatprep.subr.bf16.mxu0 %v1358
    %1556 = vmatpush2.bf16.msra.mxu0 %v1357
    %1557 = vmatprep.mubr.bf16.mxu0 %v865
    %1558 = vmatmul.mubr.bf16.gmra.mxu0 %v864
    %v1559 = vpop.f32.mrf.mxu0
    %v1560 = vadd.f32 %v1001, %v1559
    %v1561 = vpop.f32.mrf.mxu0
    %v1562 = vadd.f32 %v1005, %v1561
    %v1563 = vpop.f32.mrf.mxu0
    %v1564 = vpop.f32.mrf.mxu0
    %1565 = vdwg.mxu0
    %1566 = vmatprep.subr.bf16.mxu0 %v1403
    %1567 = vmatpush1.bf16.msra.mxu0 %v1402
    %1568 = vmatprep.subr.bf16.mxu0 %v1400
    %1569 = vmatpush1.bf16.msra.mxu0 %v1399
    %1570 = vmatprep.subr.bf16.mxu0 %v1397
    %1571 = vmatpush1.bf16.msra.mxu0 %v1396
    %1572 = vmatprep.subr.bf16.mxu0 %v1394
    %1573 = vmatpush1.bf16.msra.mxu0 %v1393
    %1574 = vmatprep.subr.bf16.mxu0 %v1391
    %1575 = vmatpush1.bf16.msra.mxu0 %v1390
    %1576 = vmatprep.subr.bf16.mxu0 %v1388
    %1577 = vmatpush1.bf16.msra.mxu0 %v1387
    %1578 = vmatprep.subr.bf16.mxu0 %v1385
    %1579 = vmatpush1.bf16.msra.mxu0 %v1384
    %1580 = vmatprep.subr.bf16.mxu0 %v1382
    %1581 = vmatpush1.bf16.msra.mxu0 %v1381
    %1582 = vmatprep.subr.bf16.mxu0 %v1427
    %1583 = vmatpush2.bf16.msra.mxu0 %v1426
    %1584 = vmatprep.subr.bf16.mxu0 %v1424
    %1585 = vmatpush2.bf16.msra.mxu0 %v1423
    %1586 = vmatprep.subr.bf16.mxu0 %v1421
    %1587 = vmatpush2.bf16.msra.mxu0 %v1420
    %1588 = vmatprep.subr.bf16.mxu0 %v1418
    %1589 = vmatpush2.bf16.msra.mxu0 %v1417
    %1590 = vmatprep.subr.bf16.mxu0 %v1415
    %1591 = vmatpush2.bf16.msra.mxu0 %v1414
    %1592 = vmatprep.subr.bf16.mxu0 %v1412
    %1593 = vmatpush2.bf16.msra.mxu0 %v1411
    %1594 = vmatprep.subr.bf16.mxu0 %v1409
    %1595 = vmatpush2.bf16.msra.mxu0 %v1408
    %1596 = vmatprep.subr.bf16.mxu0 %v1406
    %1597 = vmatpush2.bf16.msra.mxu0 %v1405
    %1598 = vmatprep.mubr.bf16.mxu0 %v867
    %1599 = vmatmul.mubr.bf16.gmra.mxu0 %v866
    %v1600 = vpop.f32.mrf.mxu0
    %v1601 = vadd.f32 %v1560, %v1600
    %v1602 = vpop.f32.mrf.mxu0
    %v1603 = vadd.f32 %v1562, %v1602
    %v1604 = vpop.f32.mrf.mxu0
    %v1605 = vpop.f32.mrf.mxu0
    %1606 = vdwg.mxu0
    %1607 = vmatprep.subr.bf16.mxu0 0
    %1608 = vmatpush1.bf16.msra.mxu0 %v1356
    %1609 = vmatprep.subr.bf16.mxu0 0
    %1610 = vmatpush1.bf16.msra.mxu0 %v1353
    %1611 = vmatprep.subr.bf16.mxu0 0
    %1612 = vmatpush1.bf16.msra.mxu0 %v1350
    %1613 = vmatprep.subr.bf16.mxu0 0
    %1614 = vmatpush1.bf16.msra.mxu0 %v1347
    %1615 = vmatprep.subr.bf16.mxu0 0
    %1616 = vmatpush1.bf16.msra.mxu0 %v1344
    %1617 = vmatprep.subr.bf16.mxu0 0
    %1618 = vmatpush1.bf16.msra.mxu0 %v1341
    %1619 = vmatprep.subr.bf16.mxu0 0
    %1620 = vmatpush1.bf16.msra.mxu0 %v1338
    %1621 = vmatprep.subr.bf16.mxu0 0
    %1622 = vmatpush1.bf16.msra.mxu0 %v1335
    %1623 = vmatprep.subr.bf16.mxu0 0
    %1624 = vmatpush2.bf16.msra.mxu0 %v1380
    %1625 = vmatprep.subr.bf16.mxu0 0
    %1626 = vmatpush2.bf16.msra.mxu0 %v1377
    %1627 = vmatprep.subr.bf16.mxu0 0
    %1628 = vmatpush2.bf16.msra.mxu0 %v1374
    %1629 = vmatprep.subr.bf16.mxu0 0
    %1630 = vmatpush2.bf16.msra.mxu0 %v1371
    %1631 = vmatprep.subr.bf16.mxu0 0
    %1632 = vmatpush2.bf16.msra.mxu0 %v1368
    %1633 = vmatprep.subr.bf16.mxu0 0
    %1634 = vmatpush2.bf16.msra.mxu0 %v1365
    %1635 = vmatprep.subr.bf16.mxu0 0
    %1636 = vmatpush2.bf16.msra.mxu0 %v1362
    %1637 = vmatprep.subr.bf16.mxu0 0
    %1638 = vmatpush2.bf16.msra.mxu0 %v1359
    %1639 = vmatprep.mubr.bf16.mxu0 %v865
    %1640 = vmatmul.mubr.bf16.gmra.mxu0 %v864
    %v1641 = vpop.f32.mrf.mxu0
    %v1642 = vadd.f32 %v1009, %v1641
    %v1643 = vpop.f32.mrf.mxu0
    %v1644 = vpop.f32.mrf.mxu0
    %v1645 = vpop.f32.mrf.mxu0
    %1646 = vdwg.mxu0
    %1647 = vmatprep.subr.bf16.mxu0 0
    %1648 = vmatpush1.bf16.msra.mxu0 %v1404
    %1649 = vmatprep.subr.bf16.mxu0 0
    %1650 = vmatpush1.bf16.msra.mxu0 %v1401
    %1651 = vmatprep.subr.bf16.mxu0 0
    %1652 = vmatpush1.bf16.msra.mxu0 %v1398
    %1653 = vmatprep.subr.bf16.mxu0 0
    %1654 = vmatpush1.bf16.msra.mxu0 %v1395
    %1655 = vmatprep.subr.bf16.mxu0 0
    %1656 = vmatpush1.bf16.msra.mxu0 %v1392
    %1657 = vmatprep.subr.bf16.mxu0 0
    %1658 = vmatpush1.bf16.msra.mxu0 %v1389
    %1659 = vmatprep.subr.bf16.mxu0 0
    %1660 = vmatpush1.bf16.msra.mxu0 %v1386
    %1661 = vmatprep.subr.bf16.mxu0 0
    %1662 = vmatpush1.bf16.msra.mxu0 %v1383
    %1663 = vmatprep.subr.bf16.mxu0 0
    %1664 = vmatpush2.bf16.msra.mxu0 %v1428
    %1665 = vmatprep.subr.bf16.mxu0 0
    %1666 = vmatpush2.bf16.msra.mxu0 %v1425
    %1667 = vmatprep.subr.bf16.mxu0 0
    %1668 = vmatpush2.bf16.msra.mxu0 %v1422
    %1669 = vmatprep.subr.bf16.mxu0 0
    %1670 = vmatpush2.bf16.msra.mxu0 %v1419
    %1671 = vmatprep.subr.bf16.mxu0 0
    %1672 = vmatpush2.bf16.msra.mxu0 %v1416
    %1673 = vmatprep.subr.bf16.mxu0 0
    %1674 = vmatpush2.bf16.msra.mxu0 %v1413
    %1675 = vmatprep.subr.bf16.mxu0 0
    %1676 = vmatpush2.bf16.msra.mxu0 %v1410
    %1677 = vmatprep.subr.bf16.mxu0 0
    %1678 = vmatpush2.bf16.msra.mxu0 %v1407
    %1679 = vmatprep.mubr.bf16.mxu0 %v867
    %1680 = vmatmul.mubr.bf16.gmra.mxu0 %v866
    %v1681 = vpop.f32.mrf.mxu0
    %v1682 = vadd.f32 %v1642, %v1681
    %v1683 = vpop.f32.mrf.mxu0
    %v1684 = vpop.f32.mrf.mxu0
    %v1685 = vpop.f32.mrf.mxu0
    %1686 = vdwg.mxu0
    %v1687 = vmax.f32 %v1601, 0.0
    %v1688 = vmax.f32 %v1603, 0.0
    %v1689 = vmax.f32 %v1682, 0.0
    %v1690 = vpack.c.bf16 %v1687, %v1687
    %v1691 = vpack.c.bf16 %v1688, %v1688
    %v1692 = vpack.c.bf16 %v1689, %v1689
    %v1693 = vld [vmem:[#allocation10] sm:$0xf]
    %v1694 = vld [vmem:[#allocation10 + $0x4] sm:$0xf]
    %v1695 = vld [vmem:[#allocation10 + $0x8] sm:$0xf]
    %v1696 = vld [vmem:[#allocation10 + $0xc] sm:$0xf]
    %v1697 = vld [vmem:[#allocation10 + $0x10] sm:$0xf]
    %v1698 = vld [vmem:[#allocation10 + $0x14] sm:$0xf]
    %v1699 = vld [vmem:[#allocation10 + $0x18] sm:$0xf]
    %v1700 = vld [vmem:[#allocation10 + $0x1c] sm:$0xf]
    %v1701 = vld [vmem:[#allocation10 + $0x20] sm:$0xf]
    %v1702 = vld [vmem:[#allocation10 + $0x24] sm:$0xf]
    %v1703 = vld [vmem:[#allocation10 + $0x28] sm:$0xf]
    %v1704 = vld [vmem:[#allocation10 + $0x2c] sm:$0xf]
    %v1705 = vld [vmem:[#allocation10 + $0x30] sm:$0xf]
    %v1706 = vld [vmem:[#allocation10 + $0x34] sm:$0xf]
    %v1707 = vld [vmem:[#allocation10 + $0x38] sm:$0xf]
    %v1708 = vld [vmem:[#allocation10 + $0x3c] sm:$0xf]
    %v1709 = vld [vmem:[#allocation10 + $0x40] sm:$0xf]
    %v1710 = vld [vmem:[#allocation10 + $0x44] sm:$0xf]
    %v1711 = vld [vmem:[#allocation10 + $0x48] sm:$0xf]
    %v1712 = vld [vmem:[#allocation10 + $0x4c] sm:$0xf]
    %v1713 = vld [vmem:[#allocation10 + $0x50] sm:$0xf]
    %v1714 = vld [vmem:[#allocation10 + $0x54] sm:$0xf]
    %v1715 = vld [vmem:[#allocation10 + $0x58] sm:$0xf]
    %v1716 = vld [vmem:[#allocation10 + $0x5c] sm:$0xf]
    %v1717 = vld [vmem:[#allocation10 + $0x60] sm:$0xf]
    %v1718 = vld [vmem:[#allocation10 + $0x64] sm:$0xf]
    %v1719 = vld [vmem:[#allocation10 + $0x68] sm:$0xf]
    %v1720 = vld [vmem:[#allocation10 + $0x6c] sm:$0xf]
    %v1721 = vld [vmem:[#allocation10 + $0x70] sm:$0xf]
    %v1722 = vld [vmem:[#allocation10 + $0x74] sm:$0xf]
    %v1723 = vld [vmem:[#allocation10 + $0x78] sm:$0xf]
    %v1724 = vld [vmem:[#allocation10 + $0x7c] sm:$0xf]
    %v1725 = vld [vmem:[#allocation10 + $0x80] sm:$0xf]
    %v1726 = vld [vmem:[#allocation10 + $0x84] sm:$0xf]
    %v1727 = vld [vmem:[#allocation10 + $0x88] sm:$0xf]
    %v1728 = vld [vmem:[#allocation10 + $0x8c] sm:$0xf]
    %v1729 = vld [vmem:[#allocation10 + $0x90] sm:$0xf]
    %v1730 = vld [vmem:[#allocation10 + $0x94] sm:$0xf]
    %v1731 = vld [vmem:[#allocation10 + $0x98] sm:$0xf]
    %v1732 = vld [vmem:[#allocation10 + $0x9c] sm:$0xf]
    %v1733 = vld [vmem:[#allocation10 + $0xa0] sm:$0xf]
    %v1734 = vld [vmem:[#allocation10 + $0xa4] sm:$0xf]
    %v1735 = vld [vmem:[#allocation10 + $0xa8] sm:$0xf]
    %v1736 = vld [vmem:[#allocation10 + $0xac] sm:$0xf]
    %v1737 = vld [vmem:[#allocation10 + $0xb0] sm:$0xf]
    %v1738 = vld [vmem:[#allocation10 + $0xb4] sm:$0xf]
    %v1739 = vld [vmem:[#allocation10 + $0xb8] sm:$0xf]
    %v1740 = vld [vmem:[#allocation10 + $0xbc] sm:$0xf]
    %v1741 = vld [vmem:[%s6] sm:$0x1]
    %v1743 = vlaneseq
    %v1744 = vshrl.u32 %v1743, 7
    %v1745 = vsub.s32 0, %v1744
    %v1746 = vrot.slane %v1741, %v1745
    %v1796 = vunpack.c.l.b16 %v1693
    %v1797 = vunpack.c.l.b16 %v1694
    %v1798 = vunpack.c.l.b16 %v1695
    %v1799 = vunpack.c.l.b16 %v1696
    %v1800 = vunpack.c.l.b16 %v1697
    %v1801 = vunpack.c.l.b16 %v1698
    %v1802 = vunpack.c.l.b16 %v1699
    %v1803 = vunpack.c.l.b16 %v1700
    %v1804 = vunpack.c.l.b16 %v1701
    %v1805 = vunpack.c.l.b16 %v1702
    %v1806 = vunpack.c.l.b16 %v1703
    %v1807 = vunpack.c.l.b16 %v1704
    %v1808 = vunpack.c.l.b16 %v1705
    %v1809 = vunpack.c.l.b16 %v1706
    %v1810 = vunpack.c.l.b16 %v1707
    %v1811 = vunpack.c.l.b16 %v1708
    %v1812 = vunpack.c.l.b16 %v1709
    %v1813 = vunpack.c.l.b16 %v1710
    %v1814 = vunpack.c.l.b16 %v1711
    %v1815 = vunpack.c.l.b16 %v1712
    %v1816 = vunpack.c.l.b16 %v1713
    %v1817 = vunpack.c.l.b16 %v1714
    %v1818 = vunpack.c.l.b16 %v1715
    %v1819 = vunpack.c.l.b16 %v1716
    %v1820 = vunpack.c.l.b16 %v1717
    %v1821 = vunpack.c.l.b16 %v1718
    %v1822 = vunpack.c.l.b16 %v1719
    %v1823 = vunpack.c.l.b16 %v1720
    %v1824 = vunpack.c.l.b16 %v1721
    %v1825 = vunpack.c.l.b16 %v1722
    %v1826 = vunpack.c.l.b16 %v1723
    %v1827 = vunpack.c.l.b16 %v1724
    %v1828 = vunpack.c.l.b16 %v1725
    %v1829 = vunpack.c.l.b16 %v1726
    %v1830 = vunpack.c.l.b16 %v1727
    %v1831 = vunpack.c.l.b16 %v1728
    %v1832 = vunpack.c.l.b16 %v1729
    %v1833 = vunpack.c.l.b16 %v1730
    %v1834 = vunpack.c.l.b16 %v1731
    %v1835 = vunpack.c.l.b16 %v1732
    %v1836 = vunpack.c.l.b16 %v1733
    %v1837 = vunpack.c.l.b16 %v1734
    %v1838 = vunpack.c.l.b16 %v1735
    %v1839 = vunpack.c.l.b16 %v1736
    %v1840 = vunpack.c.l.b16 %v1737
    %v1841 = vunpack.c.l.b16 %v1738
    %v1842 = vunpack.c.l.b16 %v1739
    %v1843 = vunpack.c.l.b16 %v1740
    %v1844 = vpack.c.b16 %v1797, %v1796
    %v1845 = vpack.c.b16 %v1799, %v1798
    %v1846 = vpack.c.b16 %v1801, %v1800
    %v1847 = vpack.c.b16 %v1803, %v1802
    %v1848 = vpack.c.b16 %v1805, %v1804
    %v1849 = vpack.c.b16 %v1807, %v1806
    %v1850 = vpack.c.b16 %v1809, %v1808
    %v1851 = vpack.c.b16 %v1811, %v1810
    %v1852 = vpack.c.b16 %v1813, %v1812
    %v1853 = vpack.c.b16 %v1815, %v1814
    %v1854 = vpack.c.b16 %v1817, %v1816
    %v1855 = vpack.c.b16 %v1819, %v1818
    %v1856 = vpack.c.b16 %v1821, %v1820
    %v1857 = vpack.c.b16 %v1823, %v1822
    %v1858 = vpack.c.b16 %v1825, %v1824
    %v1859 = vpack.c.b16 %v1827, %v1826
    %v1860 = vpack.c.b16 %v1829, %v1828
    %v1861 = vpack.c.b16 %v1831, %v1830
    %v1862 = vpack.c.b16 %v1833, %v1832
    %v1863 = vpack.c.b16 %v1835, %v1834
    %v1864 = vpack.c.b16 %v1837, %v1836
    %v1865 = vpack.c.b16 %v1839, %v1838
    %v1866 = vpack.c.b16 %v1841, %v1840
    %v1867 = vpack.c.b16 %v1843, %v1842
    %1892 = vmatprep.subr.bf16.mxu0 0
    %1893 = vmatpush1.bf16.msra.mxu0 %v1851
    %1894 = vmatprep.subr.bf16.mxu0 0
    %1895 = vmatpush1.bf16.msra.mxu0 %v1850
    %1896 = vmatprep.subr.bf16.mxu0 0
    %1897 = vmatpush1.bf16.msra.mxu0 %v1849
    %1898 = vmatprep.subr.bf16.mxu0 0
    %1899 = vmatpush1.bf16.msra.mxu0 %v1848
    %1900 = vmatprep.subr.bf16.mxu0 0
    %1901 = vmatpush1.bf16.msra.mxu0 %v1847
    %1902 = vmatprep.subr.bf16.mxu0 0
    %1903 = vmatpush1.bf16.msra.mxu0 %v1846
    %1904 = vmatprep.subr.bf16.mxu0 0
    %1905 = vmatpush1.bf16.msra.mxu0 %v1845
    %1906 = vmatprep.subr.bf16.mxu0 0
    %1907 = vmatpush1.bf16.msra.mxu0 %v1844
    %1908 = vmatprep.subr.bf16.mxu0 0
    %1909 = vmatpush2.bf16.msra.mxu0 %v1859
    %1910 = vmatprep.subr.bf16.mxu0 0
    %1911 = vmatpush2.bf16.msra.mxu0 %v1858
    %1912 = vmatprep.subr.bf16.mxu0 0
    %1913 = vmatpush2.bf16.msra.mxu0 %v1857
    %1914 = vmatprep.subr.bf16.mxu0 0
    %1915 = vmatpush2.bf16.msra.mxu0 %v1856
    %1916 = vmatprep.subr.bf16.mxu0 0
    %1917 = vmatpush2.bf16.msra.mxu0 %v1855
    %1918 = vmatprep.subr.bf16.mxu0 0
    %1919 = vmatpush2.bf16.msra.mxu0 %v1854
    %1920 = vmatprep.subr.bf16.mxu0 0
    %1921 = vmatpush2.bf16.msra.mxu0 %v1853
    %1922 = vmatprep.subr.bf16.mxu0 0
    %1923 = vmatpush2.bf16.msra.mxu0 %v1852
    %1924 = vmatprep.mubr.bf16.mxu0 %v1691
    %1925 = vmatmul.mubr.bf16.gmra.mxu0 %v1690
    %v1926 = vpop.f32.mrf.mxu0
    %v1927 = vadd.f32 %v1746, %v1926
    %v1928 = vpop.f32.mrf.mxu0
    %v1929 = vpop.f32.mrf.mxu0
    %v1930 = vpop.f32.mrf.mxu0
    %1931 = vdwg.mxu0
    %1932 = vmatprep.subr.bf16.mxu0 0
    %1933 = vmatpush1.bf16.msra.mxu0 %v1867
    %1934 = vmatprep.subr.bf16.mxu0 0
    %1935 = vmatpush1.bf16.msra.mxu0 %v1866
    %1936 = vmatprep.subr.bf16.mxu0 0
    %1937 = vmatpush1.bf16.msra.mxu0 %v1865
    %1938 = vmatprep.subr.bf16.mxu0 0
    %1939 = vmatpush1.bf16.msra.mxu0 %v1864
    %1940 = vmatprep.subr.bf16.mxu0 0
    %1941 = vmatpush1.bf16.msra.mxu0 %v1863
    %1942 = vmatprep.subr.bf16.mxu0 0
    %1943 = vmatpush1.bf16.msra.mxu0 %v1862
    %1944 = vmatprep.subr.bf16.mxu0 0
    %1945 = vmatpush1.bf16.msra.mxu0 %v1861
    %1946 = vmatprep.subr.bf16.mxu0 0
    %1947 = vmatpush1.bf16.msra.mxu0 %v1860
    %1948 = vmatprep.subr.bf16.mxu0 0
    %1949 = vmatpush2.bf16.msra.mxu0 0
    %1950 = vmatprep.subr.bf16.mxu0 0
    %1951 = vmatpush2.bf16.msra.mxu0 0
    %1952 = vmatprep.subr.bf16.mxu0 0
    %1953 = vmatpush2.bf16.msra.mxu0 0
    %1954 = vmatprep.subr.bf16.mxu0 0
    %1955 = vmatpush2.bf16.msra.mxu0 0
    %1956 = vmatprep.subr.bf16.mxu0 0
    %1957 = vmatpush2.bf16.msra.mxu0 0
    %1958 = vmatprep.subr.bf16.mxu0 0
    %1959 = vmatpush2.bf16.msra.mxu0 0
    %1960 = vmatprep.subr.bf16.mxu0 0
    %1961 = vmatpush2.bf16.msra.mxu0 0
    %1962 = vmatprep.subr.bf16.mxu0 0
    %1963 = vmatpush2.bf16.msra.mxu0 0
    %1964 = vmatprep.mubr.bf16.mxu0 0
    %1965 = vmatmul.mubr.bf16.gmra.mxu0 %v1692
    %v1966 = vpop.f32.mrf.mxu0
    %v1967 = vadd.f32 %v1927, %v1966
    %v1968 = vpop.f32.mrf.mxu0
    %v1969 = vpop.f32.mrf.mxu0
    %v1970 = vpop.f32.mrf.mxu0
    %1971 = vdwg.mxu0
    %v1972 = vtanh.pop %v1967
    %v1973 = vmul.f32 %v1972, 0.4
    %1974 = vst [vmem:[#allocation11] sm:$0xff] %v1973
    // Predicated region
    $region50: #{tpu_custom_call.1} parent=1 // pred_check
      _
    $region51: #{tpu_custom_call.1} parent=1 // pred_check_branch
      %1976 = sbr.rel (0) target = $region53
    $region52: #{tpu_custom_call.1} parent=1 // pred_region
      %s1978 = ssub.s32 128, 128
      %1979 = vsyncadd [#allocation4], %s1978
      %s1981 = sshll.u32 [#allocation11], 4
      %s1982 = int_to_ptr.vmem [resolvable:$true] %s1981
      %1984 = dma.vmem_to_hbm [thread:$0]  %s1982, 128, %s7, [#allocation4]
    $region53: #{tpu_custom_call.1} parent=1 // pred_fallthru
      _
    // Predicated region
    $region54: #{tpu_custom_call.1} parent=1 // pred_check
      _
    $region55: #{tpu_custom_call.1} parent=1 // pred_check_branch
      %1986 = sbr.rel (0) target = $region57
    $region56: #{tpu_custom_call.1} parent=1 // pred_region
      %1987 = dma.done [#allocation4], 128
    $region57: #{tpu_custom_call.1} parent=1 // pred_fallthru
      _
    %1988 = vsyncpa [#allocation3], 1
    %1989 = vsyncpa [#allocation6], 1
    %1990 = vsyncpa [#allocation9], 1
    %1991 = vsyncpa [#allocation4], 1

</llo_original>
